<compile_context>
chip_gen: v7x
topology: tpu7x:2x2x1
jax: 0.10.0
libtpu: 0.0.40
codegen_flags: <defaults>
</compile_context>

<pallas_src>
import functools

import jax
import jax.numpy as jnp
from jax.experimental import pallas as pl
from jax.experimental.pallas import tpu as pltpu


def _round_up(x, m):
  return ((x + m - 1) // m) * m


# ----------------------------------------------------------------------------
# Wrapper: host-side layout prep (tiling, packing, inverse) + one pallas_call
# with a batch-parallel grid.
# ----------------------------------------------------------------------------
def trans_mlp_forward(x, x_t, y_t, adj, params, eps):
  """x: (b, t, n, 1), x_t: (b, t, 1), adj: (n, n), eps: (b, n, ebd_dim)."""
  del y_t  # only used by the (unimplemented) ODE branch
  b, t, n, d = x.shape
  assert d == 1
  E = params["exp_w2"].shape[0]
  H = params["fit_w2"].shape[0]
  T_out = params["out_w2"].shape[1]
  TE = t * E
  W_out = _round_up(T_out + 2 * E, 128)   # lane-dense packed output width
  f32 = jnp.float32
  bf16 = jnp.bfloat16

  # ---- graph-learner matrices (host glue); applied per-batch inside the grid
  mask = 1.0 - jnp.eye(n, dtype=f32)
  A = jnp.eye(n, dtype=f32) - (adj.astype(f32) * mask).T        # (n, n)
  A_inv = jnp.linalg.inv(A)                                     # (n, n)

  # ---- activations, flat (b, n, t*E) layout (pre-repeat is 8 KiB here; see
  # ---- review note: switch to a (T, TE) selector matmul only if R*T*E grows)
  xs = jnp.transpose(x[..., 0], (0, 2, 1))                      # (b, n, t)
  x_rep = jnp.repeat(xs.astype(f32), E, axis=-1)                # (b, n, TE)
  xt_rep = jnp.repeat(x_t[..., 0].astype(f32), E, axis=-1)[:, None, :]  # (b,1,TE)
  eps3 = eps.astype(f32)                                        # (b, n, E)

  # ---- weight packing (host-side)
  W_vec = max(TE, H, 2 * E, T_out)

  def _pad_cols(v, width, dtype=f32):
    v = v.astype(f32)
    return jnp.pad(v, ((0, 0), (0, width - v.shape[1]))).astype(dtype)

  def _tile_t(v):                        # (1, E) -> (1, TE): repeat per step
    return _pad_cols(jnp.tile(v.astype(f32), (1, t)), W_vec)

  musd_b = jnp.concatenate([params["mu_b"], params["std_b"]], axis=1)   # (1,2E)
  vec_slab = jnp.concatenate([
      _tile_t(params["exp_w1"]), _tile_t(params["exp_b1"]),
      _tile_t(params["exp_b2"]),
      _tile_t(params["pos_w1"]), _tile_t(params["pos_b1"]),
      _tile_t(params["pos_b2"]),
      _pad_cols(params["fit_b1"], W_vec), _pad_cols(params["fit_b2"], W_vec),
      _pad_cols(musd_b, W_vec),
      _pad_cols(params["out_b1"], W_vec), _pad_cols(params["out_b2"], W_vec),
  ], axis=0)                                                   # (11, W_vec) f32

  # only the two small (E, E) layer-2 weights cross HBM (bf16); the block-diag
  # kron(I_T, .) slab is built inside the kernel in VMEM.
  w2_small = jnp.concatenate(
      [params["exp_w2"], params["pos_w2"]], axis=0).astype(bf16)  # (2E, E)

  fit_w1 = params["fit_w1"].astype(bf16)                          # (TE, H)

  W_small = max(E, 2 * E, H, T_out)
  musd_w = jnp.concatenate([params["mu_w"], params["std_w"]], axis=1)  # (E, 2E)
  small_w = jnp.concatenate([
      _pad_cols(params["fit_w2"], W_small, bf16),
      _pad_cols(musd_w, W_small, bf16),
      _pad_cols(params["out_w1"], W_small, bf16),
      _pad_cols(params["out_w2"], W_small, bf16),
  ], axis=0)                                                    # (2H+2E, W_small)
  off_fit_w2 = 0
  off_musd = H
  off_out_w1 = H + E
  off_out_w2 = H + 2 * E

  # --------------------------------------------------------------------------
  # Kernel (one batch per grid step): elementwise f32 math, bf16-operand MXU
  # dots with f32 accumulation, static ref slices, one lane-dense output store.
  # --------------------------------------------------------------------------
  def kernel(x_ref, xt_ref, eps_ref, a_ref, ainv_ref, w2s_ref,
             vec_ref, fw1_ref, sw_ref, out_ref, w2blk):
    dot = functools.partial(jnp.dot, preferred_element_type=f32)

    # build kron(I_T, exp_w2) / kron(I_T, pos_w2) block-diagonals in VMEM.
    # Rebuilt every grid step (cheap) so it stays correct if the "parallel"
    # batch axis is sharded across TensorCores (per-core scratch).
    w2blk[...] = jnp.zeros_like(w2blk)
    exp_w2 = w2s_ref[0:E, :]
    pos_w2 = w2s_ref[E:2 * E, :]
    for tt in range(t):
      lo, hi = tt * E, (tt + 1) * E
      w2blk[lo:hi, lo:hi] = exp_w2
      w2blk[TE + lo:TE + hi, lo:hi] = pos_w2

    exp_w1 = vec_ref[0:1, 0:TE]
    exp_b1 = vec_ref[1:2, 0:TE]
    exp_b2 = vec_ref[2:3, 0:TE]
    pos_w1 = vec_ref[3:4, 0:TE]
    pos_b1 = vec_ref[4:5, 0:TE]
    pos_b2 = vec_ref[5:6, 0:TE]
    fit_b1 = vec_ref[6:7, 0:H]
    fit_b2 = vec_ref[7:8, 0:E]
    musd_bb = vec_ref[8:9, 0:2 * E]
    out_b1 = vec_ref[9:10, 0:H]
    out_b2 = vec_ref[10:11, 0:T_out]

    xb = x_ref[0]                                   # (n, TE)
    xtb = xt_ref[0]                                 # (1, TE)
    epsb = eps_ref[0]                               # (n, E)

    # exp_ebd over all (n, t) at once in the flat (n, T*E) layout
    h1 = jnp.tanh(xb * exp_w1 + exp_b1)             # (n, TE)  f32
    x_emb = jnp.tanh(dot(h1.astype(bf16), w2blk[0:TE, :]) + exp_b2)

    # pos_ebd: node-independent -> compute once per batch, broadcast over nodes
    ht = jnp.tanh(xtb * pos_w1 + pos_b1)            # (1, TE)
    t_emb = jnp.tanh(dot(ht.astype(bf16), w2blk[TE:2 * TE, :]) + pos_b2)
    feat = x_emb + t_emb                            # (n, TE)

    # fitting_model_in: one K = T*E dot, then H -> E
    y1 = jnp.tanh(dot(feat.astype(bf16), fw1_ref[...]) + fit_b1)           # (n,H)
    yh = jnp.tanh(dot(y1.astype(bf16),
                      sw_ref[off_fit_w2:off_fit_w2 + H, 0:E]) + fit_b2)    # (n,E)

    # fused mu/log_var head: ONE (n,E)@(E,2E) dot, then ONE graph-learner dot
    mulv = dot(yh.astype(bf16),
               sw_ref[off_musd:off_musd + E, 0:2 * E]) + musd_bb           # (n,2E)
    mulv = dot(a_ref[...], mulv)                                           # (n,2E)

    mu = mulv[:, 0:E]
    lv = mulv[:, E:2 * E]

    # reparameterization (f32 elementwise / EUP) + inverse graph transform
    sigma = jnp.sqrt(jnp.exp(lv) + 1e-10)
    z = mu + sigma * epsb
    z = dot(ainv_ref[...], z)                                              # (n,E)

    # fitting_model_out (mlp head)
    o1 = jnp.tanh(dot(z.astype(bf16),
                      sw_ref[off_out_w1:off_out_w1 + E, 0:H]) + out_b1)    # (n,H)
    y = dot(o1.astype(bf16),
            sw_ref[off_out_w2:off_out_w2 + H, 0:T_out]) + out_b2           # (n,T_out)

    # single lane-dense packed store: [y | mu | lv | zero-pad] -> (n, W_out)
    pieces = [y, mulv]
    pad_w = W_out - (T_out + 2 * E)
    if pad_w > 0:
      pieces.append(jnp.zeros((n, pad_w), f32))
    out_ref[0] = jnp.concatenate(pieces, axis=-1)

  in_specs = [
      pl.BlockSpec((1, n, TE), lambda i: (i, 0, 0)),          # x_rep
      pl.BlockSpec((1, 1, TE), lambda i: (i, 0, 0)),          # xt_rep
      pl.BlockSpec((1, n, E), lambda i: (i, 0, 0)),           # eps
      pl.BlockSpec((n, n), lambda i: (0, 0)),                 # A
      pl.BlockSpec((n, n), lambda i: (0, 0)),                 # A_inv
      pl.BlockSpec((2 * E, E), lambda i: (0, 0)),             # w2_small (bf16)
      pl.BlockSpec(vec_slab.shape, lambda i: (0, 0)),         # bias/row-vec slab
      pl.BlockSpec((TE, H), lambda i: (0, 0)),                # fit_w1 (bf16)
      pl.BlockSpec(small_w.shape, lambda i: (0, 0)),          # small heads (bf16)
  ]
  out_specs = pl.BlockSpec((1, n, W_out), lambda i: (i, 0, 0))
  out_shape = jax.ShapeDtypeStruct((b, n, W_out), f32)

  packed = pl.pallas_call(
      kernel,
      grid=(b,),                                   # batch-parallel grid axis
      in_specs=in_specs,
      out_specs=out_specs,
      out_shape=out_shape,
      scratch_shapes=[pltpu.VMEM((2 * TE, TE), bf16)],   # in-VMEM block-diag W2
      compiler_params=pltpu.CompilerParams(
          dimension_semantics=("parallel",)),
  )(x_rep, xt_rep, eps3, A, A_inv, w2_small, vec_slab, fit_w1, small_w)

  # unpack the lane-dense slab host-side (free slices / transpose)
  y = packed[:, :, 0:T_out]                                   # (b, n, T_out)
  mu = packed[:, :, T_out:T_out + E]                          # (b, n, E)
  lv = packed[:, :, T_out + E:T_out + 2 * E]                  # (b, n, E)
  y_pred = jnp.transpose(y, (0, 2, 1))[..., None]             # 'b n (t d)->b t n d'
  return y_pred, mu, lv


# ----------------------------------------------------------------------------
# Deterministic parameter init (xavier-uniform weights, uniform biases);
# weights stored pre-transposed as (in, out); fit_w1 kept flat (T*E, H).
# ----------------------------------------------------------------------------
def init_params(key, in_dim, hid_dim, ebd_dim, out_dim):
  def xavier(k, fi, fo):
    lim = (6.0 / (fi + fo)) ** 0.5
    return jax.random.uniform(k, (fi, fo), jnp.float32, -lim, lim)

  def bias(k, fi, fo):
    lim = 1.0 / (fi ** 0.5)
    return jax.random.uniform(k, (1, fo), jnp.float32, -lim, lim)

  ks = jax.random.split(key, 20)
  E, H, T, TO = ebd_dim, hid_dim, in_dim, out_dim + 1
  return {
      "exp_w1": xavier(ks[0], 1, E),  "exp_b1": bias(ks[1], 1, E),
      "exp_w2": xavier(ks[2], E, E),  "exp_b2": bias(ks[3], E, E),
      "pos_w1": xavier(ks[4], 1, E),  "pos_b1": bias(ks[5], 1, E),
      "pos_w2": xavier(ks[6], E, E),  "pos_b2": bias(ks[7], E, E),
      "fit_w1": xavier(ks[8], T * E, H),
      "fit_b1": bias(ks[9], T * E, H),
      "fit_w2": xavier(ks[10], H, E), "fit_b2": bias(ks[11], H, E),
      "mu_w": xavier(ks[12], E, E),   "mu_b": bias(ks[13], E, E),
      "std_w": xavier(ks[14], E, E),  "std_b": bias(ks[15], E, E),
      "out_w1": xavier(ks[16], E, H), "out_b1": bias(ks[17], E, H),
      "out_w2": xavier(ks[18], H, TO), "out_b2": bias(ks[19], H, TO),
  }


# ----------------------------------------------------------------------------
# Pure-JAX reference (mirrors the PyTorch forward) for a correctness check.
# ----------------------------------------------------------------------------
def ref_forward(x, x_t, adj, params, eps):
  b, t, n, d = x.shape
  h = jnp.tanh(x @ params["exp_w1"] + params["exp_b1"][0])
  xe = jnp.tanh(h @ params["exp_w2"] + params["exp_b2"][0])        # (b,t,n,E)
  x_ = jnp.transpose(xe, (0, 2, 1, 3)).reshape(b, n, -1)
  ht = jnp.tanh(x_t @ params["pos_w1"] + params["pos_b1"][0])      # (b,t,E)
  te = jnp.tanh(ht @ params["pos_w2"] + params["pos_b2"][0])
  xt_ = jnp.broadcast_to(te[:, None], (b, n, t, te.shape[-1])).reshape(b, n, -1)
  feat = x_ + xt_
  y1 = jnp.tanh(feat @ params["fit_w1"] + params["fit_b1"][0])
  yh = jnp.tanh(y1 @ params["fit_w2"] + params["fit_b2"][0])
  mu = yh @ params["mu_w"] + params["mu_b"][0]
  lv = yh @ params["std_w"] + params["std_b"][0]
  mask = 1.0 - jnp.eye(n)
  A = jnp.eye(n) - (adj * mask).T
  mu = jnp.einsum("ij,bje->bie", A, mu)
  lv = jnp.einsum("ij,bje->bie", A, lv)
  sigma = jnp.sqrt(jnp.exp(lv) + 1e-10)
  z = mu + sigma * eps
  z = jnp.einsum("ij,bje->bie", jnp.linalg.inv(A), z)
  o1 = jnp.tanh(z @ params["out_w1"] + params["out_b1"][0])
  y = o1 @ params["out_w2"] + params["out_b2"][0]
  y_pred = jnp.transpose(y, (0, 2, 1))[..., None]
  return y_pred, mu, lv


if __name__ == "__main__":
  # small shapes implied by the forward: in_dim = t, feature d = 1
  B, T, N = 2, 8, 4            # batch, time steps (in_dim), nodes
  EBD, HID, OUT = 32, 32, 7    # ebd_dim, hid_dim, out_dim (out_dim+1 = 8)

  root = jax.random.PRNGKey(0)
  k_p, k_x, k_t, k_adj, k_eps = jax.random.split(root, 5)

  params = init_params(k_p, T, HID, EBD, OUT)
  x = jax.random.normal(k_x, (B, T, N, 1), jnp.float32)
  x_t = jnp.broadcast_to(
      jnp.linspace(0.0, 1.0, T, dtype=jnp.float32)[None, :, None], (B, T, 1))
  y_t = jnp.zeros((B, OUT, 1), jnp.float32)              # only used by ODE path
  # scaled adjacency keeps A = I - adj^T well conditioned (A_inv bounded)
  adj = jax.random.uniform(k_adj, (N, N), jnp.float32) * 0.3
  eps = jax.random.normal(k_eps, (B, N, EBD), jnp.float32)  # torch.randn surrogate

  y_pred, mu, log_var = trans_mlp_forward(x, x_t, y_t, adj, params, eps)
  jax.block_until_ready((y_pred, mu, log_var))

  y_ref, mu_ref, lv_ref = ref_forward(x, x_t, adj, params, eps)
  assert y_pred.shape == (B, OUT + 1, N, 1)
  assert mu.shape == (B, N, EBD) and log_var.shape == (B, N, EBD)
  # bf16 MXU weight operands (f32 accumulation) -> compare to the f32 reference
  # with a tolerance that covers bf16 quantization noise but still catches
  # structural bugs (which produce O(1) errors).
  assert jnp.allclose(y_pred, y_ref, atol=3e-2, rtol=3e-2)
  assert jnp.allclose(mu, mu_ref, atol=3e-2, rtol=3e-2)
  assert jnp.allclose(log_var, lv_ref, atol=3e-2, rtol=3e-2)

  print("KERNEL_OK")
</pallas_src>

<mosaic_0001>
module attributes {stable_mosaic.version = 11 : i64} {
  func.func @kernel(%arg0: i32, %arg1: memref<1x4x256xf32, #tpu.memory_space<vmem>>, %arg2: memref<1x1x256xf32, #tpu.memory_space<vmem>>, %arg3: memref<1x4x32xf32, #tpu.memory_space<vmem>>, %arg4: memref<4x4xf32, #tpu.memory_space<vmem>>, %arg5: memref<4x4xf32, #tpu.memory_space<vmem>>, %arg6: memref<64x32xbf16, #tpu.memory_space<vmem>>, %arg7: memref<11x256xf32, #tpu.memory_space<vmem>>, %arg8: memref<256x32xbf16, #tpu.memory_space<vmem>>, %arg9: memref<128x64xbf16, #tpu.memory_space<vmem>>, %arg10: memref<1x4x128xf32, #tpu.memory_space<vmem>>, %arg11: memref<512x256xbf16, #tpu.memory_space<vmem>>) attributes {dimension_semantics = [#tpu.dimension_semantics<parallel>], iteration_bounds = array<i64: 2>, scalar_prefetch = 0 : i64, scratch_operands = 1 : i64, tpu.core_type = #tpu.core_type<tc>, window_params = [{transform_indices = @transform_0, window_bounds = array<i64: 1, 4, 256>}, {transform_indices = @transform_1, window_bounds = array<i64: 1, 1, 256>}, {transform_indices = @transform_2, window_bounds = array<i64: 1, 4, 32>}, {pipeline_mode = #tpu.pipeline_mode<synchronous>, transform_indices = @transform_3, window_bounds = array<i64: 4, 4>}, {pipeline_mode = #tpu.pipeline_mode<synchronous>, transform_indices = @transform_4, window_bounds = array<i64: 4, 4>}, {pipeline_mode = #tpu.pipeline_mode<synchronous>, transform_indices = @transform_5, window_bounds = array<i64: 64, 32>}, {pipeline_mode = #tpu.pipeline_mode<synchronous>, transform_indices = @transform_6, window_bounds = array<i64: 11, 256>}, {pipeline_mode = #tpu.pipeline_mode<synchronous>, transform_indices = @transform_7, window_bounds = array<i64: 256, 32>}, {pipeline_mode = #tpu.pipeline_mode<synchronous>, transform_indices = @transform_8, window_bounds = array<i64: 128, 64>}, {transform_indices = @transform_9, window_bounds = array<i64: 1, 4, 128>}]} {
    %cst = arith.constant 0.000000e+00 : bf16
    %0 = vector.broadcast %cst : bf16 to vector<512x256xbf16>
    %c0 = arith.constant 0 : index
    %c0_0 = arith.constant 0 : index
    %1 = vector.load %arg11[%c0, %c0_0] : memref<512x256xbf16, #tpu.memory_space<vmem>>, vector<512x256xbf16>
    tpu.vector_store %arg11[%c0, %c0_0], %0 {strides = array<i32>} : memref<512x256xbf16, #tpu.memory_space<vmem>>, vector<512x256xbf16>,
    %c0_1 = arith.constant 0 : index
    %c0_2 = arith.constant 0 : index
    %2 = vector.load %arg6[%c0_1, %c0_2] : memref<64x32xbf16, #tpu.memory_space<vmem>>, vector<32x32xbf16>
    %c32 = arith.constant 32 : index
    %c0_3 = arith.constant 0 : index
    %3 = vector.load %arg6[%c32, %c0_3] : memref<64x32xbf16, #tpu.memory_space<vmem>>, vector<32x32xbf16>
    %c0_4 = arith.constant 0 : index
    %c0_5 = arith.constant 0 : index
    %4 = vector.load %arg11[%c0_4, %c0_5] : memref<512x256xbf16, #tpu.memory_space<vmem>>, vector<32x32xbf16>
    tpu.vector_store %arg11[%c0_4, %c0_5], %2 {strides = array<i32>} : memref<512x256xbf16, #tpu.memory_space<vmem>>, vector<32x32xbf16>,
    %c256 = arith.constant 256 : index
    %c0_6 = arith.constant 0 : index
    %5 = vector.load %arg11[%c256, %c0_6] : memref<512x256xbf16, #tpu.memory_space<vmem>>, vector<32x32xbf16>
    tpu.vector_store %arg11[%c256, %c0_6], %3 {strides = array<i32>} : memref<512x256xbf16, #tpu.memory_space<vmem>>, vector<32x32xbf16>,
    %c32_7 = arith.constant 32 : index
    %c32_8 = arith.constant 32 : index
    %6 = vector.load %arg11[%c32_7, %c32_8] : memref<512x256xbf16, #tpu.memory_space<vmem>>, vector<32x32xbf16>
    tpu.vector_store %arg11[%c32_7, %c32_8], %2 {strides = array<i32>} : memref<512x256xbf16, #tpu.memory_space<vmem>>, vector<32x32xbf16>,
    %c288 = arith.constant 288 : index
    %c32_9 = arith.constant 32 : index
    %7 = vector.load %arg11[%c288, %c32_9] : memref<512x256xbf16, #tpu.memory_space<vmem>>, vector<32x32xbf16>
    tpu.vector_store %arg11[%c288, %c32_9], %3 {strides = array<i32>} : memref<512x256xbf16, #tpu.memory_space<vmem>>, vector<32x32xbf16>,
    %c64 = arith.constant 64 : index
    %c64_10 = arith.constant 64 : index
    %8 = vector.load %arg11[%c64, %c64_10] : memref<512x256xbf16, #tpu.memory_space<vmem>>, vector<32x32xbf16>
    tpu.vector_store %arg11[%c64, %c64_10], %2 {strides = array<i32>} : memref<512x256xbf16, #tpu.memory_space<vmem>>, vector<32x32xbf16>,
    %c320 = arith.constant 320 : index
    %c64_11 = arith.constant 64 : index
    %9 = vector.load %arg11[%c320, %c64_11] : memref<512x256xbf16, #tpu.memory_space<vmem>>, vector<32x32xbf16>
    tpu.vector_store %arg11[%c320, %c64_11], %3 {strides = array<i32>} : memref<512x256xbf16, #tpu.memory_space<vmem>>, vector<32x32xbf16>,
    %c96 = arith.constant 96 : index
    %c96_12 = arith.constant 96 : index
    %10 = vector.load %arg11[%c96, %c96_12] : memref<512x256xbf16, #tpu.memory_space<vmem>>, vector<32x32xbf16>
    tpu.vector_store %arg11[%c96, %c96_12], %2 {strides = array<i32>} : memref<512x256xbf16, #tpu.memory_space<vmem>>, vector<32x32xbf16>,
    %c352 = arith.constant 352 : index
    %c96_13 = arith.constant 96 : index
    %11 = vector.load %arg11[%c352, %c96_13] : memref<512x256xbf16, #tpu.memory_space<vmem>>, vector<32x32xbf16>
    tpu.vector_store %arg11[%c352, %c96_13], %3 {strides = array<i32>} : memref<512x256xbf16, #tpu.memory_space<vmem>>, vector<32x32xbf16>,
    %c128 = arith.constant 128 : index
    %c128_14 = arith.constant 128 : index
    %12 = vector.load %arg11[%c128, %c128_14] : memref<512x256xbf16, #tpu.memory_space<vmem>>, vector<32x32xbf16>
    tpu.vector_store %arg11[%c128, %c128_14], %2 {strides = array<i32>} : memref<512x256xbf16, #tpu.memory_space<vmem>>, vector<32x32xbf16>,
    %c384 = arith.constant 384 : index
    %c128_15 = arith.constant 128 : index
    %13 = vector.load %arg11[%c384, %c128_15] : memref<512x256xbf16, #tpu.memory_space<vmem>>, vector<32x32xbf16>
    tpu.vector_store %arg11[%c384, %c128_15], %3 {strides = array<i32>} : memref<512x256xbf16, #tpu.memory_space<vmem>>, vector<32x32xbf16>,
    %c160 = arith.constant 160 : index
    %c160_16 = arith.constant 160 : index
    %14 = vector.load %arg11[%c160, %c160_16] : memref<512x256xbf16, #tpu.memory_space<vmem>>, vector<32x32xbf16>
    tpu.vector_store %arg11[%c160, %c160_16], %2 {strides = array<i32>} : memref<512x256xbf16, #tpu.memory_space<vmem>>, vector<32x32xbf16>,
    %c416 = arith.constant 416 : index
    %c160_17 = arith.constant 160 : index
    %15 = vector.load %arg11[%c416, %c160_17] : memref<512x256xbf16, #tpu.memory_space<vmem>>, vector<32x32xbf16>
    tpu.vector_store %arg11[%c416, %c160_17], %3 {strides = array<i32>} : memref<512x256xbf16, #tpu.memory_space<vmem>>, vector<32x32xbf16>,
    %c192 = arith.constant 192 : index
    %c192_18 = arith.constant 192 : index
    %16 = vector.load %arg11[%c192, %c192_18] : memref<512x256xbf16, #tpu.memory_space<vmem>>, vector<32x32xbf16>
    tpu.vector_store %arg11[%c192, %c192_18], %2 {strides = array<i32>} : memref<512x256xbf16, #tpu.memory_space<vmem>>, vector<32x32xbf16>,
    %c448 = arith.constant 448 : index
    %c192_19 = arith.constant 192 : index
    %17 = vector.load %arg11[%c448, %c192_19] : memref<512x256xbf16, #tpu.memory_space<vmem>>, vector<32x32xbf16>
    tpu.vector_store %arg11[%c448, %c192_19], %3 {strides = array<i32>} : memref<512x256xbf16, #tpu.memory_space<vmem>>, vector<32x32xbf16>,
    %c224 = arith.constant 224 : index
    %c224_20 = arith.constant 224 : index
    %18 = vector.load %arg11[%c224, %c224_20] : memref<512x256xbf16, #tpu.memory_space<vmem>>, vector<32x32xbf16>
    tpu.vector_store %arg11[%c224, %c224_20], %2 {strides = array<i32>} : memref<512x256xbf16, #tpu.memory_space<vmem>>, vector<32x32xbf16>,
    %c480 = arith.constant 480 : index
    %c224_21 = arith.constant 224 : index
    %19 = vector.load %arg11[%c480, %c224_21] : memref<512x256xbf16, #tpu.memory_space<vmem>>, vector<32x32xbf16>
    tpu.vector_store %arg11[%c480, %c224_21], %3 {strides = array<i32>} : memref<512x256xbf16, #tpu.memory_space<vmem>>, vector<32x32xbf16>,
    %c0_22 = arith.constant 0 : index
    %c0_23 = arith.constant 0 : index
    %20 = vector.load %arg7[%c0_22, %c0_23] : memref<11x256xf32, #tpu.memory_space<vmem>>, vector<1x256xf32>
    %c1 = arith.constant 1 : index
    %c0_24 = arith.constant 0 : index
    %21 = vector.load %arg7[%c1, %c0_24] : memref<11x256xf32, #tpu.memory_space<vmem>>, vector<1x256xf32>
    %c2 = arith.constant 2 : index
    %c0_25 = arith.constant 0 : index
    %22 = vector.load %arg7[%c2, %c0_25] : memref<11x256xf32, #tpu.memory_space<vmem>>, vector<1x256xf32>
    %c3 = arith.constant 3 : index
    %c0_26 = arith.constant 0 : index
    %23 = vector.load %arg7[%c3, %c0_26] : memref<11x256xf32, #tpu.memory_space<vmem>>, vector<1x256xf32>
    %c4 = arith.constant 4 : index
    %c0_27 = arith.constant 0 : index
    %24 = vector.load %arg7[%c4, %c0_27] : memref<11x256xf32, #tpu.memory_space<vmem>>, vector<1x256xf32>
    %c5 = arith.constant 5 : index
    %c0_28 = arith.constant 0 : index
    %25 = vector.load %arg7[%c5, %c0_28] : memref<11x256xf32, #tpu.memory_space<vmem>>, vector<1x256xf32>
    %c6 = arith.constant 6 : index
    %c0_29 = arith.constant 0 : index
    %26 = vector.load %arg7[%c6, %c0_29] : memref<11x256xf32, #tpu.memory_space<vmem>>, vector<1x32xf32>
    %c7 = arith.constant 7 : index
    %c0_30 = arith.constant 0 : index
    %27 = vector.load %arg7[%c7, %c0_30] : memref<11x256xf32, #tpu.memory_space<vmem>>, vector<1x32xf32>
    %c8 = arith.constant 8 : index
    %c0_31 = arith.constant 0 : index
    %28 = vector.load %arg7[%c8, %c0_31] : memref<11x256xf32, #tpu.memory_space<vmem>>, vector<1x64xf32>
    %c9 = arith.constant 9 : index
    %c0_32 = arith.constant 0 : index
    %29 = vector.load %arg7[%c9, %c0_32] : memref<11x256xf32, #tpu.memory_space<vmem>>, vector<1x32xf32>
    %c10 = arith.constant 10 : index
    %c0_33 = arith.constant 0 : index
    %30 = vector.load %arg7[%c10, %c0_33] : memref<11x256xf32, #tpu.memory_space<vmem>>, vector<1x8xf32>
    %c0_34 = arith.constant 0 : index
    %c0_35 = arith.constant 0 : index
    %c0_36 = arith.constant 0 : index
    %31 = vector.load %arg1[%c0_34, %c0_35, %c0_36] : memref<1x4x256xf32, #tpu.memory_space<vmem>>, vector<1x4x256xf32>
    %32 = vector.shape_cast %31 : vector<1x4x256xf32> to vector<4x256xf32>
    %c0_37 = arith.constant 0 : index
    %c0_38 = arith.constant 0 : index
    %c0_39 = arith.constant 0 : index
    %33 = vector.load %arg2[%c0_37, %c0_38, %c0_39] : memref<1x1x256xf32, #tpu.memory_space<vmem>>, vector<1x1x256xf32>
    %34 = vector.shape_cast %33 : vector<1x1x256xf32> to vector<1x256xf32>
    %c0_40 = arith.constant 0 : index
    %c0_41 = arith.constant 0 : index
    %c0_42 = arith.constant 0 : index
    %35 = vector.load %arg3[%c0_40, %c0_41, %c0_42] : memref<1x4x32xf32, #tpu.memory_space<vmem>>, vector<1x4x32xf32>
    %36 = vector.shape_cast %35 : vector<1x4x32xf32> to vector<4x32xf32>
    %37 = vector.broadcast %20 : vector<1x256xf32> to vector<4x256xf32>
    %38 = arith.mulf %32, %37 : vector<4x256xf32>
    %39 = vector.broadcast %21 : vector<1x256xf32> to vector<4x256xf32>
    %40 = arith.addf %38, %39 : vector<4x256xf32>
    %41 = math.tanh %40 : vector<4x256xf32>
    %42 = arith.truncf %41 : vector<4x256xf32> to vector<4x256xbf16>
    %c0_43 = arith.constant 0 : index
    %c0_44 = arith.constant 0 : index
    %43 = vector.load %arg11[%c0_43, %c0_44] : memref<512x256xbf16, #tpu.memory_space<vmem>>, vector<256x256xbf16>
    %cst_45 = arith.constant dense<0.000000e+00> : vector<4x256xf32>
    %44 = tpu.matmul %42, %43, %cst_45 {dimension_numbers = #tpu.dot_dimension_numbers<[1], [0], [0], [1], [0, 0, 1, 1], [], []>} : vector<4x256xbf16>, vector<256x256xbf16>, vector<4x256xf32> -> vector<4x256xf32>
    %45 = vector.broadcast %22 : vector<1x256xf32> to vector<4x256xf32>
    %46 = arith.addf %44, %45 : vector<4x256xf32>
    %47 = math.tanh %46 : vector<4x256xf32>
    %48 = arith.mulf %34, %23 : vector<1x256xf32>
    %49 = arith.addf %48, %24 : vector<1x256xf32>
    %50 = math.tanh %49 : vector<1x256xf32>
    %51 = arith.truncf %50 : vector<1x256xf32> to vector<1x256xbf16>
    %c256_46 = arith.constant 256 : index
    %c0_47 = arith.constant 0 : index
    %52 = vector.load %arg11[%c256_46, %c0_47] : memref<512x256xbf16, #tpu.memory_space<vmem>>, vector<256x256xbf16>
    %cst_48 = arith.constant dense<0.000000e+00> : vector<1x256xf32>
    %53 = tpu.matmul %51, %52, %cst_48 {dimension_numbers = #tpu.dot_dimension_numbers<[1], [0], [0], [1], [0, 0, 1, 1], [], []>} : vector<1x256xbf16>, vector<256x256xbf16>, vector<1x256xf32> -> vector<1x256xf32>
    %54 = arith.addf %53, %25 : vector<1x256xf32>
    %55 = math.tanh %54 : vector<1x256xf32>
    %56 = vector.broadcast %55 : vector<1x256xf32> to vector<4x256xf32>
    %57 = arith.addf %47, %56 : vector<4x256xf32>
    %58 = arith.truncf %57 : vector<4x256xf32> to vector<4x256xbf16>
    %c0_49 = arith.constant 0 : index
    %c0_50 = arith.constant 0 : index
    %59 = vector.load %arg8[%c0_49, %c0_50] : memref<256x32xbf16, #tpu.memory_space<vmem>>, vector<256x32xbf16>
    %cst_51 = arith.constant dense<0.000000e+00> : vector<4x32xf32>
    %60 = tpu.matmul %58, %59, %cst_51 {dimension_numbers = #tpu.dot_dimension_numbers<[1], [0], [0], [1], [0, 0, 1, 1], [], []>} : vector<4x256xbf16>, vector<256x32xbf16>, vector<4x32xf32> -> vector<4x32xf32>
    %61 = vector.broadcast %26 : vector<1x32xf32> to vector<4x32xf32>
    %62 = arith.addf %60, %61 : vector<4x32xf32>
    %63 = math.tanh %62 : vector<4x32xf32>
    %64 = arith.truncf %63 : vector<4x32xf32> to vector<4x32xbf16>
    %c0_52 = arith.constant 0 : index
    %c0_53 = arith.constant 0 : index
    %65 = vector.load %arg9[%c0_52, %c0_53] : memref<128x64xbf16, #tpu.memory_space<vmem>>, vector<32x32xbf16>
    %cst_54 = arith.constant dense<0.000000e+00> : vector<4x32xf32>
    %66 = tpu.matmul %64, %65, %cst_54 {dimension_numbers = #tpu.dot_dimension_numbers<[1], [0], [0], [1], [0, 0, 1, 1], [], []>} : vector<4x32xbf16>, vector<32x32xbf16>, vector<4x32xf32> -> vector<4x32xf32>
    %67 = vector.broadcast %27 : vector<1x32xf32> to vector<4x32xf32>
    %68 = arith.addf %66, %67 : vector<4x32xf32>
    %69 = math.tanh %68 : vector<4x32xf32>
    %70 = arith.truncf %69 : vector<4x32xf32> to vector<4x32xbf16>
    %c32_55 = arith.constant 32 : index
    %c0_56 = arith.constant 0 : index
    %71 = vector.load %arg9[%c32_55, %c0_56] : memref<128x64xbf16, #tpu.memory_space<vmem>>, vector<32x64xbf16>
    %cst_57 = arith.constant dense<0.000000e+00> : vector<4x64xf32>
    %72 = tpu.matmul %70, %71, %cst_57 {dimension_numbers = #tpu.dot_dimension_numbers<[1], [0], [0], [1], [0, 0, 1, 1], [], []>} : vector<4x32xbf16>, vector<32x64xbf16>, vector<4x64xf32> -> vector<4x64xf32>
    %73 = vector.broadcast %28 : vector<1x64xf32> to vector<4x64xf32>
    %74 = arith.addf %72, %73 : vector<4x64xf32>
    %c0_58 = arith.constant 0 : index
    %c0_59 = arith.constant 0 : index
    %75 = vector.load %arg4[%c0_58, %c0_59] : memref<4x4xf32, #tpu.memory_space<vmem>>, vector<4x4xf32>
    %cst_60 = arith.constant dense<0.000000e+00> : vector<4x64xf32>
    %76 = tpu.matmul %75, %74, %cst_60 {dimension_numbers = #tpu.dot_dimension_numbers<[1], [0], [0], [1], [0, 0, 1, 1], [], []>} : vector<4x4xf32>, vector<4x64xf32>, vector<4x64xf32> -> vector<4x64xf32>
    %77 = vector.extract_strided_slice %76 {offsets = [0, 0], sizes = [4, 32], strides = [1, 1]} : vector<4x64xf32> to vector<4x32xf32>
    %78 = vector.extract_strided_slice %76 {offsets = [0, 32], sizes = [4, 32], strides = [1, 1]} : vector<4x64xf32> to vector<4x32xf32>
    %79 = math.exp %78 : vector<4x32xf32>
    %cst_61 = arith.constant 1.000000e-10 : f32
    %80 = vector.broadcast %cst_61 : f32 to vector<4x32xf32>
    %81 = arith.addf %79, %80 : vector<4x32xf32>
    %82 = math.sqrt %81 : vector<4x32xf32>
    %83 = arith.mulf %82, %36 : vector<4x32xf32>
    %84 = arith.addf %77, %83 : vector<4x32xf32>
    %c0_62 = arith.constant 0 : index
    %c0_63 = arith.constant 0 : index
    %85 = vector.load %arg5[%c0_62, %c0_63] : memref<4x4xf32, #tpu.memory_space<vmem>>, vector<4x4xf32>
    %cst_64 = arith.constant dense<0.000000e+00> : vector<4x32xf32>
    %86 = tpu.matmul %85, %84, %cst_64 {dimension_numbers = #tpu.dot_dimension_numbers<[1], [0], [0], [1], [0, 0, 1, 1], [], []>} : vector<4x4xf32>, vector<4x32xf32>, vector<4x32xf32> -> vector<4x32xf32>
    %87 = arith.truncf %86 : vector<4x32xf32> to vector<4x32xbf16>
    %c64_65 = arith.constant 64 : index
    %c0_66 = arith.constant 0 : index
    %88 = vector.load %arg9[%c64_65, %c0_66] : memref<128x64xbf16, #tpu.memory_space<vmem>>, vector<32x32xbf16>
    %cst_67 = arith.constant dense<0.000000e+00> : vector<4x32xf32>
    %89 = tpu.matmul %87, %88, %cst_67 {dimension_numbers = #tpu.dot_dimension_numbers<[1], [0], [0], [1], [0, 0, 1, 1], [], []>} : vector<4x32xbf16>, vector<32x32xbf16>, vector<4x32xf32> -> vector<4x32xf32>
    %90 = vector.broadcast %29 : vector<1x32xf32> to vector<4x32xf32>
    %91 = arith.addf %89, %90 : vector<4x32xf32>
    %92 = math.tanh %91 : vector<4x32xf32>
    %93 = arith.truncf %92 : vector<4x32xf32> to vector<4x32xbf16>
    %c96_68 = arith.constant 96 : index
    %c0_69 = arith.constant 0 : index
    %94 = vector.load %arg9[%c96_68, %c0_69] : memref<128x64xbf16, #tpu.memory_space<vmem>>, vector<32x8xbf16>
    %cst_70 = arith.constant dense<0.000000e+00> : vector<4x8xf32>
    %95 = tpu.matmul %93, %94, %cst_70 {dimension_numbers = #tpu.dot_dimension_numbers<[1], [0], [0], [1], [0, 0, 1, 1], [], []>} : vector<4x32xbf16>, vector<32x8xbf16>, vector<4x8xf32> -> vector<4x8xf32>
    %96 = vector.broadcast %30 : vector<1x8xf32> to vector<4x8xf32>
    %97 = arith.addf %95, %96 : vector<4x8xf32>
    %cst_71 = arith.constant 0.000000e+00 : f32
    %98 = vector.broadcast %cst_71 : f32 to vector<4x56xf32>
    %99 = tpu.concatenate %97, %76, %98 in 1 : vector<4x8xf32>, vector<4x64xf32>, vector<4x56xf32> -> vector<4x128xf32>
    %c0_72 = arith.constant 0 : index
    %c0_73 = arith.constant 0 : index
    %c0_74 = arith.constant 0 : index
    %100 = vector.load %arg10[%c0_72, %c0_73, %c0_74] : memref<1x4x128xf32, #tpu.memory_space<vmem>>, vector<1x4x128xf32>
    %101 = vector.shape_cast %100 : vector<1x4x128xf32> to vector<4x128xf32>
    %102 = vector.shape_cast %99 : vector<4x128xf32> to vector<1x4x128xf32>
    tpu.vector_store %arg10[%c0_72, %c0_73, %c0_74], %102 {strides = array<i32>} : memref<1x4x128xf32, #tpu.memory_space<vmem>>, vector<1x4x128xf32>,
    return
  }
  func.func @transform_0(%arg0: i32) -> (i32, i32, i32) {
    %c0_i32 = arith.constant 0 : i32
    %c0_i32_0 = arith.constant 0 : i32
    %c0_i32_1 = arith.constant 0 : i32
    return %arg0, %c0_i32, %c0_i32_0 : i32, i32, i32
  }
  func.func @transform_1(%arg0: i32) -> (i32, i32, i32) {
    %c0_i32 = arith.constant 0 : i32
    %c0_i32_0 = arith.constant 0 : i32
    %c0_i32_1 = arith.constant 0 : i32
    return %arg0, %c0_i32, %c0_i32_0 : i32, i32, i32
  }
  func.func @transform_2(%arg0: i32) -> (i32, i32, i32) {
    %c0_i32 = arith.constant 0 : i32
    %c0_i32_0 = arith.constant 0 : i32
    %c0_i32_1 = arith.constant 0 : i32
    return %arg0, %c0_i32, %c0_i32_0 : i32, i32, i32
  }
  func.func @transform_3(%arg0: i32) -> (i32, i32) {
    %c0_i32 = arith.constant 0 : i32
    %c0_i32_0 = arith.constant 0 : i32
    %c0_i32_1 = arith.constant 0 : i32
    return %c0_i32, %c0_i32_0 : i32, i32
  }
  func.func @transform_4(%arg0: i32) -> (i32, i32) {
    %c0_i32 = arith.constant 0 : i32
    %c0_i32_0 = arith.constant 0 : i32
    %c0_i32_1 = arith.constant 0 : i32
    return %c0_i32, %c0_i32_0 : i32, i32
  }
  func.func @transform_5(%arg0: i32) -> (i32, i32) {
    %c0_i32 = arith.constant 0 : i32
    %c0_i32_0 = arith.constant 0 : i32
    %c0_i32_1 = arith.constant 0 : i32
    return %c0_i32, %c0_i32_0 : i32, i32
  }
  func.func @transform_6(%arg0: i32) -> (i32, i32) {
    %c0_i32 = arith.constant 0 : i32
    %c0_i32_0 = arith.constant 0 : i32
    %c0_i32_1 = arith.constant 0 : i32
    return %c0_i32, %c0_i32_0 : i32, i32
  }
  func.func @transform_7(%arg0: i32) -> (i32, i32) {
    %c0_i32 = arith.constant 0 : i32
    %c0_i32_0 = arith.constant 0 : i32
    %c0_i32_1 = arith.constant 0 : i32
    return %c0_i32, %c0_i32_0 : i32, i32
  }
  func.func @transform_8(%arg0: i32) -> (i32, i32) {
    %c0_i32 = arith.constant 0 : i32
    %c0_i32_0 = arith.constant 0 : i32
    %c0_i32_1 = arith.constant 0 : i32
    return %c0_i32, %c0_i32_0 : i32, i32
  }
  func.func @transform_9(%arg0: i32) -> (i32, i32, i32) {
    %c0_i32 = arith.constant 0 : i32
    %c0_i32_0 = arith.constant 0 : i32
    %c0_i32_1 = arith.constant 0 : i32
    return %arg0, %c0_i32, %c0_i32_0 : i32, i32, i32
  }
}

</mosaic_0001>

<llo_original>
// kernel: tpu_custom_call.1
$region0: #{tpu_custom_call.1}
  #allocation0 [shape = 'u32[]', space=smem, size = 0x4, offset = 0x4, fixed_abs, tag = 'smem constant byte address 0x4 - core index']
  #allocation1 [shape = 'u32[144,128]{1,0:T(1,128)}', space=vmem, size = 0x12000, scoped, tag = 'internal scratch']
  #allocation2 [shape = 'bf16[512,256]{1,0:T(16,128)(2,1)}', space=vmem, size = 0x40000, scoped, tag = 'scratch operand']
  %s0 = inlined_call_operand.vmem [shape: f32[2,4,256], index: 0, kind: input, shape index: {}]
  %s1 = inlined_call_operand.vmem [shape: f32[2,1,256], index: 1, kind: input, shape index: {}]
  %s2 = inlined_call_operand.vmem [shape: f32[2,4,32], index: 2, kind: input, shape index: {}]
  %s3 = inlined_call_operand.vmem [shape: f32[4,4], index: 3, kind: input, shape index: {}]
  %s4 = inlined_call_operand.vmem [shape: f32[4,4], index: 4, kind: input, shape index: {}]
  %s5 = inlined_call_operand.vmem [shape: bf16[64,32], index: 5, kind: input, shape index: {}]
  %s6 = inlined_call_operand.vmem [shape: f32[11,256], index: 6, kind: input, shape index: {}]
  %s7 = inlined_call_operand.vmem [shape: bf16[256,32], index: 7, kind: input, shape index: {}]
  %s8 = inlined_call_operand.vmem [shape: bf16[128,64], index: 8, kind: input, shape index: {}]
  %s9 = inlined_call_operand.hbm [shape: f32[2,4,128], index: 9, kind: output, shape index: {}]
  %s10 = sld [smem:[#allocation0]]
  $region69: #{tpu_custom_call.1} parent=0
    _
  %s12 = ssub.s32 1, %s10
  %s13 = scalar_select 0, %s12, %s10
  $region1: #{tpu_custom_call.1} parent=0
    #allocation3 [shape = 'u8[4096]{0}', space=vmem, size = 0x1000, scoped, tag = 'output window, operand 0']
    #allocation4 [shape = 's32[2]{0}', space=sflag, size = 0x8, scoped, tag = 'scoped memory for tpu_custom_call.1']
    %14 = vsyncpa [#allocation4], 0
    %s15 = scalar_lea.sflag [#allocation4], 1
    %16 = vsyncpa %s15, 0
    loop: start=0, step=1, limit=4
    $region2: #{tpu_custom_call.1} parent=1 // loop_pre_header
      _
    $region3: #{tpu_custom_call.1} parent=1 // loop_header
      %s18 = sphi 0, %s22
      %p19 = scmp.ge.s32.totalorder %s18, 4
      %s28 = sphi 0, %s30
      %s31 = sphi 0, %s28
      %s32 = sphi 0, %s31
      %s48 = sphi 0, %s32
      %s54 = sphi 0, %s56
      %s57 = sphi 0, %s54
      %s58 = sphi 0, %s57
      %s74 = sphi 0, %s58
      %s80 = sphi 0, %s82
      %s83 = sphi 0, %s80
      %s84 = sphi 0, %s83
      %s100 = sphi 0, %s84
      %s104 = sphi 0, %s104
      %s106 = sphi 0, %s104
      %s107 = sphi 0, %s106
      %s121 = sphi 0, %s107
      %s125 = sphi 0, %s125
      %s127 = sphi 0, %s125
      %s128 = sphi 0, %s127
      %s142 = sphi 0, %s128
      %s146 = sphi 0, %s146
      %s148 = sphi 0, %s146
      %s149 = sphi 0, %s148
      %s163 = sphi 0, %s149
      %s167 = sphi 0, %s167
      %s169 = sphi 0, %s167
      %s170 = sphi 0, %s169
      %s184 = sphi 0, %s170
      %s188 = sphi 0, %s188
      %s190 = sphi 0, %s188
      %s191 = sphi 0, %s190
      %s205 = sphi 0, %s191
      %s209 = sphi 0, %s209
      %s211 = sphi 0, %s209
      %s212 = sphi 0, %s211
      %s226 = sphi 0, %s212
      %s232 = sphi 0, %s234
      %s235 = sphi 0, %s232
      %s236 = sphi 0, %s235
      %s252 = sphi 0, %s236
    $region4: #{tpu_custom_call.1} parent=1 // loop_header_branch
      %21 = sbr.rel (%p19) target = $region8
    $region5: #{tpu_custom_call.1} parent=1 // loop_body
      %s23 = ssub.s32 %s18, 1
      %s24 = ssub.s32 %s18, 2
      %s25 = sadd.s32 %s18, 1
      %s26 = ssub.s32 %s18, %s25
      %p27 = scmp.eq.s32.totalorder %s26, 0
      %s29 = sadd.s32 %s28, 1
      %s30 = scalar_select %p27, %s28, %s29
      %p33 = pneg %p27
      %p34 = scmp.eq.s32.totalorder %s18, 1
      %p35 = por %p33, %p34
      %p36 = scmp.ne.s32.totalorder %s28, %s31
      %p37 = scmp.eq.s32.totalorder %s18, 0
      %p38 = por %p36, %p37
      %p39 = scmp.ne.s32.totalorder %s28, %s31
      %p40 = scmp.eq.s32.totalorder %s23, 1
      %p41 = por %p39, %p40
      %p42 = scmp.ne.s32.totalorder %s31, %s32
      %p43 = scmp.eq.s32.totalorder %s23, 0
      %p44 = por %p42, %p43
      %p45 = scmp.ne.s32.totalorder %s31, %s32
      %p46 = scmp.eq.s32.totalorder %s24, 1
      %p47 = por %p45, %p46
      %p49 = scmp.ne.s32.totalorder %s32, %s48
      %p50 = scmp.eq.s32.totalorder %s24, 0
      %p51 = por %p49, %p50
      %s52 = ssub.s32 %s18, %s25
      %p53 = scmp.eq.s32.totalorder %s52, 0
      %s55 = sadd.s32 %s54, 1
      %s56 = scalar_select %p53, %s54, %s55
      %p59 = pneg %p53
      %p60 = scmp.eq.s32.totalorder %s18, 1
      %p61 = por %p59, %p60
      %p62 = scmp.ne.s32.totalorder %s54, %s57
      %p63 = scmp.eq.s32.totalorder %s18, 0
      %p64 = por %p62, %p63
      %p65 = scmp.ne.s32.totalorder %s54, %s57
      %p66 = scmp.eq.s32.totalorder %s23, 1
      %p67 = por %p65, %p66
      %p68 = scmp.ne.s32.totalorder %s57, %s58
      %p69 = scmp.eq.s32.totalorder %s23, 0
      %p70 = por %p68, %p69
      %p71 = scmp.ne.s32.totalorder %s57, %s58
      %p72 = scmp.eq.s32.totalorder %s24, 1
      %p73 = por %p71, %p72
      %p75 = scmp.ne.s32.totalorder %s58, %s74
      %p76 = scmp.eq.s32.totalorder %s24, 0
      %p77 = por %p75, %p76
      %s78 = ssub.s32 %s18, %s25
      %p79 = scmp.eq.s32.totalorder %s78, 0
      %s81 = sadd.s32 %s80, 1
      %s82 = scalar_select %p79, %s80, %s81
      %p85 = pneg %p79
      %p86 = scmp.eq.s32.totalorder %s18, 1
      %p87 = por %p85, %p86
      %p88 = scmp.ne.s32.totalorder %s80, %s83
      %p89 = scmp.eq.s32.totalorder %s18, 0
      %p90 = por %p88, %p89
      %p91 = scmp.ne.s32.totalorder %s80, %s83
      %p92 = scmp.eq.s32.totalorder %s23, 1
      %p93 = por %p91, %p92
      %p94 = scmp.ne.s32.totalorder %s83, %s84
      %p95 = scmp.eq.s32.totalorder %s23, 0
      %p96 = por %p94, %p95
      %p97 = scmp.ne.s32.totalorder %s83, %s84
      %p98 = scmp.eq.s32.totalorder %s24, 1
      %p99 = por %p97, %p98
      %p101 = scmp.ne.s32.totalorder %s84, %s100
      %p102 = scmp.eq.s32.totalorder %s24, 0
      %p103 = por %p101, %p102
      %s105 = sadd.s32 %s104, 1
      %p108 = scmp.eq.s32.totalorder %s18, 1
      %p109 = scmp.ne.s32.totalorder %s104, %s106
      %p110 = scmp.eq.s32.totalorder %s18, 0
      %p111 = por %p109, %p110
      %p112 = scmp.ne.s32.totalorder %s104, %s106
      %p113 = scmp.eq.s32.totalorder %s23, 1
      %p114 = por %p112, %p113
      %p115 = scmp.ne.s32.totalorder %s106, %s107
      %p116 = scmp.eq.s32.totalorder %s23, 0
      %p117 = por %p115, %p116
      %p118 = scmp.ne.s32.totalorder %s106, %s107
      %p119 = scmp.eq.s32.totalorder %s24, 1
      %p120 = por %p118, %p119
      %p122 = scmp.ne.s32.totalorder %s107, %s121
      %p123 = scmp.eq.s32.totalorder %s24, 0
      %p124 = por %p122, %p123
      %s126 = sadd.s32 %s125, 1
      %p129 = scmp.eq.s32.totalorder %s18, 1
      %p130 = scmp.ne.s32.totalorder %s125, %s127
      %p131 = scmp.eq.s32.totalorder %s18, 0
      %p132 = por %p130, %p131
      %p133 = scmp.ne.s32.totalorder %s125, %s127
      %p134 = scmp.eq.s32.totalorder %s23, 1
      %p135 = por %p133, %p134
      %p136 = scmp.ne.s32.totalorder %s127, %s128
      %p137 = scmp.eq.s32.totalorder %s23, 0
      %p138 = por %p136, %p137
      %p139 = scmp.ne.s32.totalorder %s127, %s128
      %p140 = scmp.eq.s32.totalorder %s24, 1
      %p141 = por %p139, %p140
      %p143 = scmp.ne.s32.totalorder %s128, %s142
      %p144 = scmp.eq.s32.totalorder %s24, 0
      %p145 = por %p143, %p144
      %s147 = sadd.s32 %s146, 1
      %p150 = scmp.eq.s32.totalorder %s18, 1
      %p151 = scmp.ne.s32.totalorder %s146, %s148
      %p152 = scmp.eq.s32.totalorder %s18, 0
      %p153 = por %p151, %p152
      %p154 = scmp.ne.s32.totalorder %s146, %s148
      %p155 = scmp.eq.s32.totalorder %s23, 1
      %p156 = por %p154, %p155
      %p157 = scmp.ne.s32.totalorder %s148, %s149
      %p158 = scmp.eq.s32.totalorder %s23, 0
      %p159 = por %p157, %p158
      %p160 = scmp.ne.s32.totalorder %s148, %s149
      %p161 = scmp.eq.s32.totalorder %s24, 1
      %p162 = por %p160, %p161
      %p164 = scmp.ne.s32.totalorder %s149, %s163
      %p165 = scmp.eq.s32.totalorder %s24, 0
      %p166 = por %p164, %p165
      %s168 = sadd.s32 %s167, 1
      %p171 = scmp.eq.s32.totalorder %s18, 1
      %p172 = scmp.ne.s32.totalorder %s167, %s169
      %p173 = scmp.eq.s32.totalorder %s18, 0
      %p174 = por %p172, %p173
      %p175 = scmp.ne.s32.totalorder %s167, %s169
      %p176 = scmp.eq.s32.totalorder %s23, 1
      %p177 = por %p175, %p176
      %p178 = scmp.ne.s32.totalorder %s169, %s170
      %p179 = scmp.eq.s32.totalorder %s23, 0
      %p180 = por %p178, %p179
      %p181 = scmp.ne.s32.totalorder %s169, %s170
      %p182 = scmp.eq.s32.totalorder %s24, 1
      %p183 = por %p181, %p182
      %p185 = scmp.ne.s32.totalorder %s170, %s184
      %p186 = scmp.eq.s32.totalorder %s24, 0
      %p187 = por %p185, %p186
      %s189 = sadd.s32 %s188, 1
      %p192 = scmp.eq.s32.totalorder %s18, 1
      %p193 = scmp.ne.s32.totalorder %s188, %s190
      %p194 = scmp.eq.s32.totalorder %s18, 0
      %p195 = por %p193, %p194
      %p196 = scmp.ne.s32.totalorder %s188, %s190
      %p197 = scmp.eq.s32.totalorder %s23, 1
      %p198 = por %p196, %p197
      %p199 = scmp.ne.s32.totalorder %s190, %s191
      %p200 = scmp.eq.s32.totalorder %s23, 0
      %p201 = por %p199, %p200
      %p202 = scmp.ne.s32.totalorder %s190, %s191
      %p203 = scmp.eq.s32.totalorder %s24, 1
      %p204 = por %p202, %p203
      %p206 = scmp.ne.s32.totalorder %s191, %s205
      %p207 = scmp.eq.s32.totalorder %s24, 0
      %p208 = por %p206, %p207
      %s210 = sadd.s32 %s209, 1
      %p213 = scmp.eq.s32.totalorder %s18, 1
      %p214 = scmp.ne.s32.totalorder %s209, %s211
      %p215 = scmp.eq.s32.totalorder %s18, 0
      %p216 = por %p214, %p215
      %p217 = scmp.ne.s32.totalorder %s209, %s211
      %p218 = scmp.eq.s32.totalorder %s23, 1
      %p219 = por %p217, %p218
      %p220 = scmp.ne.s32.totalorder %s211, %s212
      %p221 = scmp.eq.s32.totalorder %s23, 0
      %p222 = por %p220, %p221
      %p223 = scmp.ne.s32.totalorder %s211, %s212
      %p224 = scmp.eq.s32.totalorder %s24, 1
      %p225 = por %p223, %p224
      %p227 = scmp.ne.s32.totalorder %s212, %s226
      %p228 = scmp.eq.s32.totalorder %s24, 0
      %p229 = por %p227, %p228
      %s230 = ssub.s32 %s18, %s25
      %p231 = scmp.eq.s32.totalorder %s230, 0
      %s233 = sadd.s32 %s232, 1
      %s234 = scalar_select %p231, %s232, %s233
      %p237 = pneg %p231
      %p238 = scmp.eq.s32.totalorder %s18, 1
      %p239 = por %p237, %p238
      %p240 = scmp.ne.s32.totalorder %s232, %s235
      %p241 = scmp.eq.s32.totalorder %s18, 0
      %p242 = por %p240, %p241
      %p243 = scmp.ne.s32.totalorder %s232, %s235
      %p244 = scmp.eq.s32.totalorder %s23, 1
      %p245 = por %p243, %p244
      %p246 = scmp.ne.s32.totalorder %s235, %s236
      %p247 = scmp.eq.s32.totalorder %s23, 0
      %p248 = por %p246, %p247
      %p249 = scmp.ne.s32.totalorder %s235, %s236
      %p250 = scmp.eq.s32.totalorder %s24, 1
      %p251 = por %p249, %p250
      %p253 = scmp.ne.s32.totalorder %s236, %s252
      %p254 = scmp.eq.s32.totalorder %s24, 0
      %p255 = por %p253, %p254
      %p256 = scmp.le.s32.totalorder 1, %s18
      %p257 = scmp.lt.s32.totalorder %s18, 3
      %p258 = pnand %p256, %p257
      %p259 = pneg %p258
      // Predicated region
      $region9: #{tpu_custom_call.1} parent=5 // pred_check
        _
      $region10: #{tpu_custom_call.1} parent=5 // pred_check_branch
        %261 = sbr.rel (%p258) target = $region12
      $region11: #{tpu_custom_call.1} parent=5 // pred_region
        %s262 = ssub.s32 %s18, 1
        // Predicated region
        $region13: #{tpu_custom_call.1} parent=11 // pred_check
          %p263 = pneg %p117
        $region14: #{tpu_custom_call.1} parent=11 // pred_check_branch
          %265 = sbr.rel (%p263) target = $region16
        $region15: #{tpu_custom_call.1} parent=11 // pred_region
          _
        $region16: #{tpu_custom_call.1} parent=11 // pred_fallthru
          _
        // Predicated region
        $region17: #{tpu_custom_call.1} parent=11 // pred_check
          %p266 = pneg %p138
        $region18: #{tpu_custom_call.1} parent=11 // pred_check_branch
          %268 = sbr.rel (%p266) target = $region20
        $region19: #{tpu_custom_call.1} parent=11 // pred_region
          _
        $region20: #{tpu_custom_call.1} parent=11 // pred_fallthru
          _
        // Predicated region
        $region21: #{tpu_custom_call.1} parent=11 // pred_check
          %p269 = pneg %p159
        $region22: #{tpu_custom_call.1} parent=11 // pred_check_branch
          %271 = sbr.rel (%p269) target = $region24
        $region23: #{tpu_custom_call.1} parent=11 // pred_region
          _
        $region24: #{tpu_custom_call.1} parent=11 // pred_fallthru
          _
        // Predicated region
        $region25: #{tpu_custom_call.1} parent=11 // pred_check
          %p272 = pneg %p180
        $region26: #{tpu_custom_call.1} parent=11 // pred_check_branch
          %274 = sbr.rel (%p272) target = $region28
        $region27: #{tpu_custom_call.1} parent=11 // pred_region
          _
        $region28: #{tpu_custom_call.1} parent=11 // pred_fallthru
          _
        // Predicated region
        $region29: #{tpu_custom_call.1} parent=11 // pred_check
          %p275 = pneg %p201
        $region30: #{tpu_custom_call.1} parent=11 // pred_check_branch
          %277 = sbr.rel (%p275) target = $region32
        $region31: #{tpu_custom_call.1} parent=11 // pred_region
          _
        $region32: #{tpu_custom_call.1} parent=11 // pred_fallthru
          _
        // Predicated region
        $region33: #{tpu_custom_call.1} parent=11 // pred_check
          %p278 = pneg %p222
        $region34: #{tpu_custom_call.1} parent=11 // pred_check_branch
          %280 = sbr.rel (%p278) target = $region36
        $region35: #{tpu_custom_call.1} parent=11 // pred_region
          _
        $region36: #{tpu_custom_call.1} parent=11 // pred_fallthru
          _
      $region12: #{tpu_custom_call.1} parent=5 // pred_fallthru
        _
      %p281 = scmp.lt.s32.totalorder %s18, 2
      // Predicated region
      $region37: #{tpu_custom_call.1} parent=5 // pred_check
        %p282 = pneg %p281
      $region38: #{tpu_custom_call.1} parent=5 // pred_check_branch
        %284 = sbr.rel (%p282) target = $region40
      $region39: #{tpu_custom_call.1} parent=5 // pred_region
        // Predicated region
        $region41: #{tpu_custom_call.1} parent=39 // pred_check
          %p285 = pneg %p38
        $region42: #{tpu_custom_call.1} parent=39 // pred_check_branch
          %287 = sbr.rel (%p285) target = $region44
        $region43: #{tpu_custom_call.1} parent=39 // pred_region
          %p288 = scmp.lt.s32.totalorder %s18, 1
          %s289 = scalar_select %p288, %s18, 1
          %s290 = smul.addr %s289, 2
          %s291 = smul.addr %s290, 4
          %s292 = scalar_lea.vmem %s0, %s291
        $region44: #{tpu_custom_call.1} parent=39 // pred_fallthru
          _
        // Predicated region
        $region45: #{tpu_custom_call.1} parent=39 // pred_check
          %p293 = pneg %p64
        $region46: #{tpu_custom_call.1} parent=39 // pred_check_branch
          %295 = sbr.rel (%p293) target = $region48
        $region47: #{tpu_custom_call.1} parent=39 // pred_region
          %p296 = scmp.lt.s32.totalorder %s18, 1
          %s297 = scalar_select %p296, %s18, 1
          %s298 = smul.addr %s297, 2
          %s299 = scalar_lea.vmem %s1, %s298
        $region48: #{tpu_custom_call.1} parent=39 // pred_fallthru
          _
        // Predicated region
        $region49: #{tpu_custom_call.1} parent=39 // pred_check
          %p300 = pneg %p90
        $region50: #{tpu_custom_call.1} parent=39 // pred_check_branch
          %302 = sbr.rel (%p300) target = $region52
        $region51: #{tpu_custom_call.1} parent=39 // pred_region
          %p303 = scmp.lt.s32.totalorder %s18, 1
          %s304 = scalar_select %p303, %s18, 1
          %s305 = smul.addr %s304, 4
          %s306 = scalar_lea.vmem %s2, %s305
        $region52: #{tpu_custom_call.1} parent=39 // pred_fallthru
          _
      $region40: #{tpu_custom_call.1} parent=5 // pred_fallthru
        _
      %p307 = scmp.le.s32.totalorder 1, %s18
      %p308 = scmp.lt.s32.totalorder %s18, 3
      %p309 = pnand %p307, %p308
      %p310 = pneg %p309
      // Predicated region
      $region53: #{tpu_custom_call.1} parent=5 // pred_check
        _
      $region54: #{tpu_custom_call.1} parent=5 // pred_check_branch
        %312 = sbr.rel (%p309) target = $region56
      $region55: #{tpu_custom_call.1} parent=5 // pred_region
        %s313 = ssub.s32 %s18, 1
        %p314 = scmp.lt.s32.totalorder %s23, 1
        %s315 = scalar_select %p314, %s23, 1
        %s316 = smul.addr %s315, 2
        %s317 = smul.addr %s316, 4
        %s318 = scalar_lea.vmem %s0, %s317
        %p319 = pneg %p44
        %p320 = pneg %p41
        %p321 = scmp.lt.s32.totalorder %s23, 1
        %s322 = scalar_select %p321, %s23, 1
        %s323 = smul.addr %s322, 2
        %s324 = scalar_lea.vmem %s1, %s323
        %p325 = pneg %p70
        %p326 = pneg %p67
        %p327 = scmp.lt.s32.totalorder %s23, 1
        %s328 = scalar_select %p327, %s23, 1
        %s329 = smul.addr %s328, 4
        %s330 = scalar_lea.vmem %s2, %s329
        %p331 = pneg %p96
        %p332 = pneg %p93
        %p333 = pneg %p117
        %p334 = pneg %p114
        %p335 = pneg %p138
        %p336 = pneg %p135
        %p337 = pneg %p159
        %p338 = pneg %p156
        %p339 = pneg %p180
        %p340 = pneg %p177
        %p341 = pneg %p201
        %p342 = pneg %p198
        %p343 = pneg %p222
        %p344 = pneg %p219
        %p345 = pneg %p248
        %p346 = pneg %p245
        %s347 = sand.u32 %s235, 1
        %s348 = scalar_lea.sflag [#allocation4], %s347
        %s349 = sand.u32 %s235, 1
        %s350 = smul.addr %s349, 4
        %s351 = scalar_lea.vmem [#allocation3], %s350
        %p352 = scmp.lt.s32.totalorder %s23, 1
        %s353 = scalar_select %p352, %s23, 1
        %s354 = smul.addr %s353, 2
        %s355 = smul.addr %s354, 4
        %s356 = scalar_lea.vmem %s0, %s355
        %p357 = scmp.lt.s32.totalorder %s23, 1
        %s358 = scalar_select %p357, %s23, 1
        %s359 = smul.addr %s358, 2
        %s360 = scalar_lea.vmem %s1, %s359
        %p361 = scmp.lt.s32.totalorder %s23, 1
        %s362 = scalar_select %p361, %s23, 1
        %s363 = smul.addr %s362, 4
        %s364 = scalar_lea.vmem %s2, %s363
        %366 = vst [vmem:[#allocation2] sm:$0xff] 0
        %367 = vst [vmem:[#allocation2 + $0x8] sm:$0xff] 0
        %368 = vst [vmem:[#allocation2 + $0x10] sm:$0xff] 0
        %369 = vst [vmem:[#allocation2 + $0x18] sm:$0xff] 0
        %370 = vst [vmem:[#allocation2 + $0x20] sm:$0xff] 0
        %371 = vst [vmem:[#allocation2 + $0x28] sm:$0xff] 0
        %372 = vst [vmem:[#allocation2 + $0x30] sm:$0xff] 0
        %373 = vst [vmem:[#allocation2 + $0x38] sm:$0xff] 0
        %374 = vst [vmem:[#allocation2 + $0x40] sm:$0xff] 0
        %375 = vst [vmem:[#allocation2 + $0x48] sm:$0xff] 0
        %376 = vst [vmem:[#allocation2 + $0x50] sm:$0xff] 0
        %377 = vst [vmem:[#allocation2 + $0x58] sm:$0xff] 0
        %378 = vst [vmem:[#allocation2 + $0x60] sm:$0xff] 0
        %379 = vst [vmem:[#allocation2 + $0x68] sm:$0xff] 0
        %380 = vst [vmem:[#allocation2 + $0x70] sm:$0xff] 0
        %381 = vst [vmem:[#allocation2 + $0x78] sm:$0xff] 0
        %382 = vst [vmem:[#allocation2 + $0x80] sm:$0xff] 0
        %383 = vst [vmem:[#allocation2 + $0x88] sm:$0xff] 0
        %384 = vst [vmem:[#allocation2 + $0x90] sm:$0xff] 0
        %385 = vst [vmem:[#allocation2 + $0x98] sm:$0xff] 0
        %386 = vst [vmem:[#allocation2 + $0xa0] sm:$0xff] 0
        %387 = vst [vmem:[#allocation2 + $0xa8] sm:$0xff] 0
        %388 = vst [vmem:[#allocation2 + $0xb0] sm:$0xff] 0
        %389 = vst [vmem:[#allocation2 + $0xb8] sm:$0xff] 0
        %390 = vst [vmem:[#allocation2 + $0xc0] sm:$0xff] 0
        %391 = vst [vmem:[#allocation2 + $0xc8] sm:$0xff] 0
        %392 = vst [vmem:[#allocation2 + $0xd0] sm:$0xff] 0
        %393 = vst [vmem:[#allocation2 + $0xd8] sm:$0xff] 0
        %394 = vst [vmem:[#allocation2 + $0xe0] sm:$0xff] 0
        %395 = vst [vmem:[#allocation2 + $0xe8] sm:$0xff] 0
        %396 = vst [vmem:[#allocation2 + $0xf0] sm:$0xff] 0
        %397 = vst [vmem:[#allocation2 + $0xf8] sm:$0xff] 0
        %398 = vst [vmem:[#allocation2 + $0x100] sm:$0xff] 0
        %399 = vst [vmem:[#allocation2 + $0x108] sm:$0xff] 0
        %400 = vst [vmem:[#allocation2 + $0x110] sm:$0xff] 0
        %401 = vst [vmem:[#allocation2 + $0x118] sm:$0xff] 0
        %402 = vst [vmem:[#allocation2 + $0x120] sm:$0xff] 0
        %403 = vst [vmem:[#allocation2 + $0x128] sm:$0xff] 0
        %404 = vst [vmem:[#allocation2 + $0x130] sm:$0xff] 0
        %405 = vst [vmem:[#allocation2 + $0x138] sm:$0xff] 0
        %406 = vst [vmem:[#allocation2 + $0x140] sm:$0xff] 0
        %407 = vst [vmem:[#allocation2 + $0x148] sm:$0xff] 0
        %408 = vst [vmem:[#allocation2 + $0x150] sm:$0xff] 0
        %409 = vst [vmem:[#allocation2 + $0x158] sm:$0xff] 0
        %410 = vst [vmem:[#allocation2 + $0x160] sm:$0xff] 0
        %411 = vst [vmem:[#allocation2 + $0x168] sm:$0xff] 0
        %412 = vst [vmem:[#allocation2 + $0x170] sm:$0xff] 0
        %413 = vst [vmem:[#allocation2 + $0x178] sm:$0xff] 0
        %414 = vst [vmem:[#allocation2 + $0x180] sm:$0xff] 0
        %415 = vst [vmem:[#allocation2 + $0x188] sm:$0xff] 0
        %416 = vst [vmem:[#allocation2 + $0x190] sm:$0xff] 0
        %417 = vst [vmem:[#allocation2 + $0x198] sm:$0xff] 0
        %418 = vst [vmem:[#allocation2 + $0x1a0] sm:$0xff] 0
        %419 = vst [vmem:[#allocation2 + $0x1a8] sm:$0xff] 0
        %420 = vst [vmem:[#allocation2 + $0x1b0] sm:$0xff] 0
        %421 = vst [vmem:[#allocation2 + $0x1b8] sm:$0xff] 0
        %422 = vst [vmem:[#allocation2 + $0x1c0] sm:$0xff] 0
        %423 = vst [vmem:[#allocation2 + $0x1c8] sm:$0xff] 0
        %424 = vst [vmem:[#allocation2 + $0x1d0] sm:$0xff] 0
        %425 = vst [vmem:[#allocation2 + $0x1d8] sm:$0xff] 0
        %426 = vst [vmem:[#allocation2 + $0x1e0] sm:$0xff] 0
        %427 = vst [vmem:[#allocation2 + $0x1e8] sm:$0xff] 0
        %428 = vst [vmem:[#allocation2 + $0x1f0] sm:$0xff] 0
        %429 = vst [vmem:[#allocation2 + $0x1f8] sm:$0xff] 0
        %v430 = vld [vmem:[%s5] sm:$0xf]
        %v431 = vld [vmem:[%s5 + $0x4] sm:$0xf]
        %v432 = vld [vmem:[%s5 + $0x8] sm:$0xf]
        %v433 = vld [vmem:[%s5 + $0xc] sm:$0xf]
        %v434 = vld [vmem:[%s5 + $0x10] sm:$0xf]
        %v435 = vld [vmem:[%s5 + $0x14] sm:$0xf]
        %v436 = vld [vmem:[%s5 + $0x18] sm:$0xf]
        %v437 = vld [vmem:[%s5 + $0x1c] sm:$0xf]
        %v442 = vunpack.c.l.b16 %v430
        %v443 = vunpack.c.l.b16 %v431
        %v444 = vunpack.c.l.b16 %v432
        %v445 = vunpack.c.l.b16 %v433
        %v446 = vpack.c.b16 %v443, %v442
        %v447 = vpack.c.b16 %v445, %v444
        %vm450 = vcmask 261120
        %451 = vst.msk [vmem:[#allocation2] sm:$0xff] %vm450, %v446
        %452 = vst.msk [vmem:[#allocation2 + $0x10] sm:$0xff] %vm450, %v447
        %v457 = vunpack.c.l.b16 %v434
        %v458 = vunpack.c.l.b16 %v435
        %v459 = vunpack.c.l.b16 %v436
        %v460 = vunpack.c.l.b16 %v437
        %v461 = vpack.c.b16 %v458, %v457
        %v462 = vpack.c.b16 %v460, %v459
        %465 = vst.msk [vmem:[#allocation2 + $0x100] sm:$0xff] %vm450, %v461
        %466 = vst.msk [vmem:[#allocation2 + $0x110] sm:$0xff] %vm450, %v462
        %467 = vrot.lane.b32.xlu0 %v446, 32
        %v468 = vpop.permute.xlu0 %467
        %469 = vrot.lane.b32.xlu0 %v447, 32
        %v470 = vpop.permute.xlu0 %469
        %vm473 = vcmask 523520
        %474 = vst.msk [vmem:[#allocation2 + $0x20] sm:$0xff] %vm473, %v468
        %475 = vst.msk [vmem:[#allocation2 + $0x30] sm:$0xff] %vm473, %v470
        %476 = vrot.lane.b32.xlu0 %v461, 32
        %v477 = vpop.permute.xlu0 %476
        %478 = vrot.lane.b32.xlu0 %v462, 32
        %v479 = vpop.permute.xlu0 %478
        %482 = vst.msk [vmem:[#allocation2 + $0x120] sm:$0xff] %vm473, %v477
        %483 = vst.msk [vmem:[#allocation2 + $0x130] sm:$0xff] %vm473, %v479
        %484 = vrot.lane.b32.xlu0 %v446, 64
        %v485 = vpop.permute.xlu0 %484
        %486 = vrot.lane.b32.xlu0 %v447, 64
        %v487 = vpop.permute.xlu0 %486
        %vm490 = vcmask 785920
        %491 = vst.msk [vmem:[#allocation2 + $0x40] sm:$0xff] %vm490, %v485
        %492 = vst.msk [vmem:[#allocation2 + $0x50] sm:$0xff] %vm490, %v487
        %493 = vrot.lane.b32.xlu0 %v461, 64
        %v494 = vpop.permute.xlu0 %493
        %495 = vrot.lane.b32.xlu0 %v462, 64
        %v496 = vpop.permute.xlu0 %495
        %499 = vst.msk [vmem:[#allocation2 + $0x140] sm:$0xff] %vm490, %v494
        %500 = vst.msk [vmem:[#allocation2 + $0x150] sm:$0xff] %vm490, %v496
        %501 = vrot.lane.b32.xlu0 %v446, 96
        %v502 = vpop.permute.xlu0 %501
        %503 = vrot.lane.b32.xlu0 %v447, 96
        %v504 = vpop.permute.xlu0 %503
        %vm507 = vcmask 1048320
        %508 = vst.msk [vmem:[#allocation2 + $0x60] sm:$0xff] %vm507, %v502
        %509 = vst.msk [vmem:[#allocation2 + $0x70] sm:$0xff] %vm507, %v504
        %510 = vrot.lane.b32.xlu0 %v461, 96
        %v511 = vpop.permute.xlu0 %510
        %512 = vrot.lane.b32.xlu0 %v462, 96
        %v513 = vpop.permute.xlu0 %512
        %516 = vst.msk [vmem:[#allocation2 + $0x160] sm:$0xff] %vm507, %v511
        %517 = vst.msk [vmem:[#allocation2 + $0x170] sm:$0xff] %vm507, %v513
        %518 = vst.msk [vmem:[#allocation2 + $0x88] sm:$0xff] %vm450, %v446
        %519 = vst.msk [vmem:[#allocation2 + $0x98] sm:$0xff] %vm450, %v447
        %520 = vst.msk [vmem:[#allocation2 + $0x188] sm:$0xff] %vm450, %v461
        %521 = vst.msk [vmem:[#allocation2 + $0x198] sm:$0xff] %vm450, %v462
        %522 = vst.msk [vmem:[#allocation2 + $0xa8] sm:$0xff] %vm473, %v468
        %523 = vst.msk [vmem:[#allocation2 + $0xb8] sm:$0xff] %vm473, %v470
        %524 = vst.msk [vmem:[#allocation2 + $0x1a8] sm:$0xff] %vm473, %v477
        %525 = vst.msk [vmem:[#allocation2 + $0x1b8] sm:$0xff] %vm473, %v479
        %526 = vst.msk [vmem:[#allocation2 + $0xc8] sm:$0xff] %vm490, %v485
        %527 = vst.msk [vmem:[#allocation2 + $0xd8] sm:$0xff] %vm490, %v487
        %528 = vst.msk [vmem:[#allocation2 + $0x1c8] sm:$0xff] %vm490, %v494
        %529 = vst.msk [vmem:[#allocation2 + $0x1d8] sm:$0xff] %vm490, %v496
        %530 = vst.msk [vmem:[#allocation2 + $0xe8] sm:$0xff] %vm507, %v502
        %531 = vst.msk [vmem:[#allocation2 + $0xf8] sm:$0xff] %vm507, %v504
        %532 = vst.msk [vmem:[#allocation2 + $0x1e8] sm:$0xff] %vm507, %v511
        %533 = vst.msk [vmem:[#allocation2 + $0x1f8] sm:$0xff] %vm507, %v513
        %v534 = vld [vmem:[%s6] ss:$8 sm:$0x3]
        %s535 = scalar_lea.vmem %s6, 1
        %v536 = vld [vmem:[%s535] ss:$8 sm:$0x3]
        %s537 = scalar_lea.vmem %s6, 2
        %v538 = vld [vmem:[%s537] ss:$8 sm:$0x3]
        %s539 = scalar_lea.vmem %s6, 3
        %v540 = vld [vmem:[%s539] ss:$8 sm:$0x3]
        %s541 = scalar_lea.vmem %s6, 4
        %v542 = vld [vmem:[%s541] ss:$8 sm:$0x3]
        %s543 = scalar_lea.vmem %s6, 5
        %v544 = vld [vmem:[%s543] ss:$8 sm:$0x3]
        %v545 = vld [vmem:[%s6 + $0x6] ss:$0 sm:$0xff]
        %v546 = vld [vmem:[%s6 + $0x7] ss:$0 sm:$0xff]
        %v547 = vld [vmem:[%s6 + $0x10] ss:$0 sm:$0xff]
        %v548 = vld [vmem:[%s6 + $0x11] ss:$0 sm:$0xff]
        %v549 = vld [vmem:[%s6 + $0x12] ss:$0 sm:$0xff]
        %v550 = vld [vmem:[%s356] sm:$0xff]
        %v551 = vld [vmem:[%s360] sm:$0x3]
        %v552 = vld [vmem:[%s364] sm:$0xf]
        %v554 = vlaneseq
        %v555 = vshrl.u32 %v554, 7
        %v556 = vsub.s32 0, %v555
        %v557 = vrot.slane %v534, %v556
        %v558 = vlaneseq
        %v559 = vshrl.u32 %v558, 7
        %v560 = vsub.s32 1, %v559
        %v561 = vrot.slane %v534, %v560
        %v562 = vcombine.low %v557, %v561
        %v564 = vmul.f32 %v550, %v562
        %v566 = vlaneseq
        %v567 = vshrl.u32 %v566, 7
        %v568 = vsub.s32 0, %v567
        %v569 = vrot.slane %v536, %v568
        %v570 = vlaneseq
        %v571 = vshrl.u32 %v570, 7
        %v572 = vsub.s32 1, %v571
        %v573 = vrot.slane %v536, %v572
        %v574 = vcombine.low %v569, %v573
        %v576 = vadd.f32 %v564, %v574
        %v577 = vtanh.pop %v576
        %v579 = vcombine.high %v577, %v577
        %v581 = vpack.c.bf16 %v577, %v577
        %v582 = vpack.c.bf16 %v579, %v579
        %v583 = vld [vmem:[#allocation2] sm:$0xff]
        %v584 = vld [vmem:[#allocation2 + $0x8] sm:$0xff]
        %v585 = vld [vmem:[#allocation2 + $0x10] sm:$0xff]
        %v586 = vld [vmem:[#allocation2 + $0x18] sm:$0xff]
        %v587 = vld [vmem:[#allocation2 + $0x20] sm:$0xff]
        %v588 = vld [vmem:[#allocation2 + $0x28] sm:$0xff]
        %v589 = vld [vmem:[#allocation2 + $0x30] sm:$0xff]
        %v590 = vld [vmem:[#allocation2 + $0x38] sm:$0xff]
        %v591 = vld [vmem:[#allocation2 + $0x40] sm:$0xff]
        %v592 = vld [vmem:[#allocation2 + $0x48] sm:$0xff]
        %v593 = vld [vmem:[#allocation2 + $0x50] sm:$0xff]
        %v594 = vld [vmem:[#allocation2 + $0x58] sm:$0xff]
        %v595 = vld [vmem:[#allocation2 + $0x60] sm:$0xff]
        %v596 = vld [vmem:[#allocation2 + $0x68] sm:$0xff]
        %v597 = vld [vmem:[#allocation2 + $0x70] sm:$0xff]
        %v598 = vld [vmem:[#allocation2 + $0x78] sm:$0xff]
        %v599 = vld [vmem:[#allocation2 + $0x80] sm:$0xff]
        %v600 = vld [vmem:[#allocation2 + $0x88] sm:$0xff]
        %v601 = vld [vmem:[#allocation2 + $0x90] sm:$0xff]
        %v602 = vld [vmem:[#allocation2 + $0x98] sm:$0xff]
        %v603 = vld [vmem:[#allocation2 + $0xa0] sm:$0xff]
        %v604 = vld [vmem:[#allocation2 + $0xa8] sm:$0xff]
        %v605 = vld [vmem:[#allocation2 + $0xb0] sm:$0xff]
        %v606 = vld [vmem:[#allocation2 + $0xb8] sm:$0xff]
        %v607 = vld [vmem:[#allocation2 + $0xc0] sm:$0xff]
        %v608 = vld [vmem:[#allocation2 + $0xc8] sm:$0xff]
        %v609 = vld [vmem:[#allocation2 + $0xd0] sm:$0xff]
        %v610 = vld [vmem:[#allocation2 + $0xd8] sm:$0xff]
        %v611 = vld [vmem:[#allocation2 + $0xe0] sm:$0xff]
        %v612 = vld [vmem:[#allocation2 + $0xe8] sm:$0xff]
        %v613 = vld [vmem:[#allocation2 + $0xf0] sm:$0xff]
        %v614 = vld [vmem:[#allocation2 + $0xf8] sm:$0xff]
        %v616 = vlaneseq
        %v617 = vshrl.u32 %v616, 7
        %v618 = vsub.s32 0, %v617
        %v619 = vrot.slane %v538, %v618
        %v620 = vlaneseq
        %v621 = vshrl.u32 %v620, 7
        %v622 = vsub.s32 1, %v621
        %v623 = vrot.slane %v538, %v622
        %626 = vmatprep.subr.bf16.mxu0 %v584
        %627 = vmatpush1.bf16.msra.mxu0 %v583
        %628 = vmatprep.subr.bf16.mxu0 %v586
        %629 = vmatpush1.bf16.msra.mxu0 %v585
        %630 = vmatprep.subr.bf16.mxu0 %v588
        %631 = vmatpush1.bf16.msra.mxu0 %v587
        %632 = vmatprep.subr.bf16.mxu0 %v590
        %633 = vmatpush1.bf16.msra.mxu0 %v589
        %634 = vmatprep.subr.bf16.mxu0 %v592
        %635 = vmatpush1.bf16.msra.mxu0 %v591
        %636 = vmatprep.subr.bf16.mxu0 %v594
        %637 = vmatpush1.bf16.msra.mxu0 %v593
        %638 = vmatprep.subr.bf16.mxu0 %v596
        %639 = vmatpush1.bf16.msra.mxu0 %v595
        %640 = vmatprep.subr.bf16.mxu0 %v598
        %641 = vmatpush1.bf16.msra.mxu0 %v597
        %642 = vmatprep.subr.bf16.mxu0 %v600
        %643 = vmatpush1.bf16.msra.mxu0 %v599
        %644 = vmatprep.subr.bf16.mxu0 %v602
        %645 = vmatpush1.bf16.msra.mxu0 %v601
        %646 = vmatprep.subr.bf16.mxu0 %v604
        %647 = vmatpush1.bf16.msra.mxu0 %v603
        %648 = vmatprep.subr.bf16.mxu0 %v606
        %649 = vmatpush1.bf16.msra.mxu0 %v605
        %650 = vmatprep.subr.bf16.mxu0 %v608
        %651 = vmatpush1.bf16.msra.mxu0 %v607
        %652 = vmatprep.subr.bf16.mxu0 %v610
        %653 = vmatpush1.bf16.msra.mxu0 %v609
        %654 = vmatprep.subr.bf16.mxu0 %v612
        %655 = vmatpush1.bf16.msra.mxu0 %v611
        %656 = vmatprep.subr.bf16.mxu0 %v614
        %657 = vmatpush1.bf16.msra.mxu0 %v613
        %658 = vmatprep.mubr.bf16.mxu0 %v582
        %659 = vmatmul.mubr.bf16.gmra.mrb[0].mxu0 %v581
        %v660 = vpop.f32.mrb[0].mxu0
        %v661 = vadd.f32 %v619, %v660
        %v662 = vpop.f32.mrb[0].mxu0
        %v663 = vadd.f32 %v623, %v662
        %v664 = vpop.f32.mrb[0].mxu0
        %v665 = vpop.f32.mrb[0].mxu0
        %666 = vdwg.mxu0
        %v667 = vtanh.pop %v661
        %v668 = vtanh.pop %v663
        %v669 = vmul.f32 %v551, %v540
        %v670 = vadd.f32 %v669, %v542
        %v671 = vtanh.pop %v670
        %v673 = vlaneseq
        %v674 = vshrl.u32 %v673, 7
        %v675 = vsub.s32 0, %v674
        %v676 = vrot.slane %v671, %v675
        %v677 = vlaneseq
        %v678 = vshrl.u32 %v677, 7
        %v679 = vsub.s32 1, %v678
        %v680 = vrot.slane %v671, %v679
        %v683 = vpack.c.bf16 %v676, %v676
        %v684 = vpack.c.bf16 %v680, %v680
        %v685 = vld [vmem:[#allocation2 + $0x100] sm:$0xff]
        %v686 = vld [vmem:[#allocation2 + $0x108] sm:$0xff]
        %v687 = vld [vmem:[#allocation2 + $0x110] sm:$0xff]
        %v688 = vld [vmem:[#allocation2 + $0x118] sm:$0xff]
        %v689 = vld [vmem:[#allocation2 + $0x120] sm:$0xff]
        %v690 = vld [vmem:[#allocation2 + $0x128] sm:$0xff]
        %v691 = vld [vmem:[#allocation2 + $0x130] sm:$0xff]
        %v692 = vld [vmem:[#allocation2 + $0x138] sm:$0xff]
        %v693 = vld [vmem:[#allocation2 + $0x140] sm:$0xff]
        %v694 = vld [vmem:[#allocation2 + $0x148] sm:$0xff]
        %v695 = vld [vmem:[#allocation2 + $0x150] sm:$0xff]
        %v696 = vld [vmem:[#allocation2 + $0x158] sm:$0xff]
        %v697 = vld [vmem:[#allocation2 + $0x160] sm:$0xff]
        %v698 = vld [vmem:[#allocation2 + $0x168] sm:$0xff]
        %v699 = vld [vmem:[#allocation2 + $0x170] sm:$0xff]
        %v700 = vld [vmem:[#allocation2 + $0x178] sm:$0xff]
        %v701 = vld [vmem:[#allocation2 + $0x180] sm:$0xff]
        %v702 = vld [vmem:[#allocation2 + $0x188] sm:$0xff]
        %v703 = vld [vmem:[#allocation2 + $0x190] sm:$0xff]
        %v704 = vld [vmem:[#allocation2 + $0x198] sm:$0xff]
        %v705 = vld [vmem:[#allocation2 + $0x1a0] sm:$0xff]
        %v706 = vld [vmem:[#allocation2 + $0x1a8] sm:$0xff]
        %v707 = vld [vmem:[#allocation2 + $0x1b0] sm:$0xff]
        %v708 = vld [vmem:[#allocation2 + $0x1b8] sm:$0xff]
        %v709 = vld [vmem:[#allocation2 + $0x1c0] sm:$0xff]
        %v710 = vld [vmem:[#allocation2 + $0x1c8] sm:$0xff]
        %v711 = vld [vmem:[#allocation2 + $0x1d0] sm:$0xff]
        %v712 = vld [vmem:[#allocation2 + $0x1d8] sm:$0xff]
        %v713 = vld [vmem:[#allocation2 + $0x1e0] sm:$0xff]
        %v714 = vld [vmem:[#allocation2 + $0x1e8] sm:$0xff]
        %v715 = vld [vmem:[#allocation2 + $0x1f0] sm:$0xff]
        %v716 = vld [vmem:[#allocation2 + $0x1f8] sm:$0xff]
        %v718 = vlaneseq
        %v719 = vshrl.u32 %v718, 7
        %v720 = vsub.s32 0, %v719
        %v721 = vrot.slane %v544, %v720
        %v722 = vlaneseq
        %v723 = vshrl.u32 %v722, 7
        %v724 = vsub.s32 1, %v723
        %v725 = vrot.slane %v544, %v724
        %728 = vmatprep.subr.bf16.mxu0 %v686
        %729 = vmatpush1.bf16.msra.mxu0 %v685
        %730 = vmatprep.subr.bf16.mxu0 %v688
        %731 = vmatpush1.bf16.msra.mxu0 %v687
        %732 = vmatprep.subr.bf16.mxu0 %v690
        %733 = vmatpush1.bf16.msra.mxu0 %v689
        %734 = vmatprep.subr.bf16.mxu0 %v692
        %735 = vmatpush1.bf16.msra.mxu0 %v691
        %736 = vmatprep.subr.bf16.mxu0 %v694
        %737 = vmatpush1.bf16.msra.mxu0 %v693
        %738 = vmatprep.subr.bf16.mxu0 %v696
        %739 = vmatpush1.bf16.msra.mxu0 %v695
        %740 = vmatprep.subr.bf16.mxu0 %v698
        %741 = vmatpush1.bf16.msra.mxu0 %v697
        %742 = vmatprep.subr.bf16.mxu0 %v700
        %743 = vmatpush1.bf16.msra.mxu0 %v699
        %744 = vmatprep.subr.bf16.mxu0 %v702
        %745 = vmatpush1.bf16.msra.mxu0 %v701
        %746 = vmatprep.subr.bf16.mxu0 %v704
        %747 = vmatpush1.bf16.msra.mxu0 %v703
        %748 = vmatprep.subr.bf16.mxu0 %v706
        %749 = vmatpush1.bf16.msra.mxu0 %v705
        %750 = vmatprep.subr.bf16.mxu0 %v708
        %751 = vmatpush1.bf16.msra.mxu0 %v707
        %752 = vmatprep.subr.bf16.mxu0 %v710
        %753 = vmatpush1.bf16.msra.mxu0 %v709
        %754 = vmatprep.subr.bf16.mxu0 %v712
        %755 = vmatpush1.bf16.msra.mxu0 %v711
        %756 = vmatprep.subr.bf16.mxu0 %v714
        %757 = vmatpush1.bf16.msra.mxu0 %v713
        %758 = vmatprep.subr.bf16.mxu0 %v716
        %759 = vmatpush1.bf16.msra.mxu0 %v715
        %760 = vmatprep.mubr.bf16.mxu0 %v684
        %761 = vmatmul.mubr.bf16.gmra.mrb[0].mxu0 %v683
        %v762 = vpop.f32.mrb[0].mxu0
        %v763 = vadd.f32 %v721, %v762
        %v764 = vpop.f32.mrb[0].mxu0
        %v765 = vadd.f32 %v725, %v764
        %v766 = vpop.f32.mrb[0].mxu0
        %v767 = vpop.f32.mrb[0].mxu0
        %768 = vdwg.mxu0
        %v769 = vtanh.pop %v763
        %v770 = vtanh.pop %v765
        %v771 = vlaneseq
        %v772 = vshrl.u32 %v771, 7
        %v773 = vsub.s32 0, %v772
        %v774 = vrot.slane %v769, %v773
        %v775 = vlaneseq
        %v776 = vshrl.u32 %v775, 7
        %v777 = vsub.s32 0, %v776
        %v778 = vrot.slane %v770, %v777
        %v779 = vadd.f32 %v667, %v774
        %v780 = vadd.f32 %v668, %v778
        %v781 = vpack.c.bf16 %v779, %v779
        %v782 = vpack.c.bf16 %v780, %v780
        %v783 = vld [vmem:[%s7] sm:$0xf]
        %v784 = vld [vmem:[%s7 + $0x4] sm:$0xf]
        %v785 = vld [vmem:[%s7 + $0x8] sm:$0xf]
        %v786 = vld [vmem:[%s7 + $0xc] sm:$0xf]
        %v787 = vld [vmem:[%s7 + $0x10] sm:$0xf]
        %v788 = vld [vmem:[%s7 + $0x14] sm:$0xf]
        %v789 = vld [vmem:[%s7 + $0x18] sm:$0xf]
        %v790 = vld [vmem:[%s7 + $0x1c] sm:$0xf]
        %v791 = vld [vmem:[%s7 + $0x20] sm:$0xf]
        %v792 = vld [vmem:[%s7 + $0x24] sm:$0xf]
        %v793 = vld [vmem:[%s7 + $0x28] sm:$0xf]
        %v794 = vld [vmem:[%s7 + $0x2c] sm:$0xf]
        %v795 = vld [vmem:[%s7 + $0x30] sm:$0xf]
        %v796 = vld [vmem:[%s7 + $0x34] sm:$0xf]
        %v797 = vld [vmem:[%s7 + $0x38] sm:$0xf]
        %v798 = vld [vmem:[%s7 + $0x3c] sm:$0xf]
        %v799 = vld [vmem:[%s7 + $0x40] sm:$0xf]
        %v800 = vld [vmem:[%s7 + $0x44] sm:$0xf]
        %v801 = vld [vmem:[%s7 + $0x48] sm:$0xf]
        %v802 = vld [vmem:[%s7 + $0x4c] sm:$0xf]
        %v803 = vld [vmem:[%s7 + $0x50] sm:$0xf]
        %v804 = vld [vmem:[%s7 + $0x54] sm:$0xf]
        %v805 = vld [vmem:[%s7 + $0x58] sm:$0xf]
        %v806 = vld [vmem:[%s7 + $0x5c] sm:$0xf]
        %v807 = vld [vmem:[%s7 + $0x60] sm:$0xf]
        %v808 = vld [vmem:[%s7 + $0x64] sm:$0xf]
        %v809 = vld [vmem:[%s7 + $0x68] sm:$0xf]
        %v810 = vld [vmem:[%s7 + $0x6c] sm:$0xf]
        %v811 = vld [vmem:[%s7 + $0x70] sm:$0xf]
        %v812 = vld [vmem:[%s7 + $0x74] sm:$0xf]
        %v813 = vld [vmem:[%s7 + $0x78] sm:$0xf]
        %v814 = vld [vmem:[%s7 + $0x7c] sm:$0xf]
        %v847 = vunpack.c.l.b16 %v783
        %v848 = vunpack.c.l.b16 %v784
        %v849 = vunpack.c.l.b16 %v785
        %v850 = vunpack.c.l.b16 %v786
        %v851 = vunpack.c.l.b16 %v787
        %v852 = vunpack.c.l.b16 %v788
        %v853 = vunpack.c.l.b16 %v789
        %v854 = vunpack.c.l.b16 %v790
        %v855 = vunpack.c.l.b16 %v791
        %v856 = vunpack.c.l.b16 %v792
        %v857 = vunpack.c.l.b16 %v793
        %v858 = vunpack.c.l.b16 %v794
        %v859 = vunpack.c.l.b16 %v795
        %v860 = vunpack.c.l.b16 %v796
        %v861 = vunpack.c.l.b16 %v797
        %v862 = vunpack.c.l.b16 %v798
        %v863 = vunpack.c.l.b16 %v799
        %v864 = vunpack.c.l.b16 %v800
        %v865 = vunpack.c.l.b16 %v801
        %v866 = vunpack.c.l.b16 %v802
        %v867 = vunpack.c.l.b16 %v803
        %v868 = vunpack.c.l.b16 %v804
        %v869 = vunpack.c.l.b16 %v805
        %v870 = vunpack.c.l.b16 %v806
        %v871 = vunpack.c.l.b16 %v807
        %v872 = vunpack.c.l.b16 %v808
        %v873 = vunpack.c.l.b16 %v809
        %v874 = vunpack.c.l.b16 %v810
        %v875 = vunpack.c.l.b16 %v811
        %v876 = vunpack.c.l.b16 %v812
        %v877 = vunpack.c.l.b16 %v813
        %v878 = vunpack.c.l.b16 %v814
        %v879 = vpack.c.b16 %v848, %v847
        %v880 = vpack.c.b16 %v850, %v849
        %v881 = vpack.c.b16 %v852, %v851
        %v882 = vpack.c.b16 %v854, %v853
        %v883 = vpack.c.b16 %v856, %v855
        %v884 = vpack.c.b16 %v858, %v857
        %v885 = vpack.c.b16 %v860, %v859
        %v886 = vpack.c.b16 %v862, %v861
        %v887 = vpack.c.b16 %v864, %v863
        %v888 = vpack.c.b16 %v866, %v865
        %v889 = vpack.c.b16 %v868, %v867
        %v890 = vpack.c.b16 %v870, %v869
        %v891 = vpack.c.b16 %v872, %v871
        %v892 = vpack.c.b16 %v874, %v873
        %v893 = vpack.c.b16 %v876, %v875
        %v894 = vpack.c.b16 %v878, %v877
        %911 = vmatprep.subr.bf16.mxu0 0
        %912 = vmatpush1.bf16.msra.mxu0 %v879
        %913 = vmatprep.subr.bf16.mxu0 0
        %914 = vmatpush1.bf16.msra.mxu0 %v880
        %915 = vmatprep.subr.bf16.mxu0 0
        %916 = vmatpush1.bf16.msra.mxu0 %v881
        %917 = vmatprep.subr.bf16.mxu0 0
        %918 = vmatpush1.bf16.msra.mxu0 %v882
        %919 = vmatprep.subr.bf16.mxu0 0
        %920 = vmatpush1.bf16.msra.mxu0 %v883
        %921 = vmatprep.subr.bf16.mxu0 0
        %922 = vmatpush1.bf16.msra.mxu0 %v884
        %923 = vmatprep.subr.bf16.mxu0 0
        %924 = vmatpush1.bf16.msra.mxu0 %v885
        %925 = vmatprep.subr.bf16.mxu0 0
        %926 = vmatpush1.bf16.msra.mxu0 %v886
        %927 = vmatprep.subr.bf16.mxu0 0
        %928 = vmatpush1.bf16.msra.mxu0 %v887
        %929 = vmatprep.subr.bf16.mxu0 0
        %930 = vmatpush1.bf16.msra.mxu0 %v888
        %931 = vmatprep.subr.bf16.mxu0 0
        %932 = vmatpush1.bf16.msra.mxu0 %v889
        %933 = vmatprep.subr.bf16.mxu0 0
        %934 = vmatpush1.bf16.msra.mxu0 %v890
        %935 = vmatprep.subr.bf16.mxu0 0
        %936 = vmatpush1.bf16.msra.mxu0 %v891
        %937 = vmatprep.subr.bf16.mxu0 0
        %938 = vmatpush1.bf16.msra.mxu0 %v892
        %939 = vmatprep.subr.bf16.mxu0 0
        %940 = vmatpush1.bf16.msra.mxu0 %v893
        %941 = vmatprep.subr.bf16.mxu0 0
        %942 = vmatpush1.bf16.msra.mxu0 %v894
        %943 = vmatprep.mubr.bf16.mxu0 %v782
        %944 = vmatmul.mubr.bf16.gmra.mrb[0].mxu0 %v781
        %v945 = vpop.f32.mrb[0].mxu0
        %v946 = vadd.f32 %v545, %v945
        %v947 = vpop.f32.mrb[0].mxu0
        %v948 = vpop.f32.mrb[0].mxu0
        %v949 = vpop.f32.mrb[0].mxu0
        %950 = vdwg.mxu0
        %v951 = vtanh.pop %v946
        %v952 = vpack.c.bf16 %v951, %v951
        %v953 = vld [vmem:[%s8] sm:$0xf]
        %v954 = vld [vmem:[%s8 + $0x4] sm:$0xf]
        %v955 = vld [vmem:[%s8 + $0x8] sm:$0xf]
        %v956 = vld [vmem:[%s8 + $0xc] sm:$0xf]
        %v961 = vunpack.c.l.b16 %v953
        %v962 = vunpack.c.l.b16 %v954
        %v963 = vunpack.c.l.b16 %v955
        %v964 = vunpack.c.l.b16 %v956
        %v965 = vpack.c.b16 %v962, %v961
        %v966 = vpack.c.b16 %v964, %v963
        %v970 = vsel %vm450, %v952, 0
        %972 = vmatprep.subr.bf16.mxu0 0
        %973 = vmatpush1.bf16.msra.mxu0 %v965
        %974 = vmatprep.subr.bf16.mxu0 0
        %975 = vmatpush1.bf16.msra.mxu0 %v966
        %976 = vmatprep.subr.bf16.mxu0 0
        %977 = vmatpush1.bf16.msra.mxu0 0
        %978 = vmatprep.subr.bf16.mxu0 0
        %979 = vmatpush1.bf16.msra.mxu0 0
        %980 = vmatprep.subr.bf16.mxu0 0
        %981 = vmatpush1.bf16.msra.mxu0 0
        %982 = vmatprep.subr.bf16.mxu0 0
        %983 = vmatpush1.bf16.msra.mxu0 0
        %984 = vmatprep.subr.bf16.mxu0 0
        %985 = vmatpush1.bf16.msra.mxu0 0
        %986 = vmatprep.subr.bf16.mxu0 0
        %987 = vmatpush1.bf16.msra.mxu0 0
        %988 = vmatprep.subr.bf16.mxu0 0
        %989 = vmatpush1.bf16.msra.mxu0 0
        %990 = vmatprep.subr.bf16.mxu0 0
        %991 = vmatpush1.bf16.msra.mxu0 0
        %992 = vmatprep.subr.bf16.mxu0 0
        %993 = vmatpush1.bf16.msra.mxu0 0
        %994 = vmatprep.subr.bf16.mxu0 0
        %995 = vmatpush1.bf16.msra.mxu0 0
        %996 = vmatprep.subr.bf16.mxu0 0
        %997 = vmatpush1.bf16.msra.mxu0 0
        %998 = vmatprep.subr.bf16.mxu0 0
        %999 = vmatpush1.bf16.msra.mxu0 0
        %1000 = vmatprep.subr.bf16.mxu0 0
        %1001 = vmatpush1.bf16.msra.mxu0 0
        %1002 = vmatprep.subr.bf16.mxu0 0
        %1003 = vmatpush1.bf16.msra.mxu0 0
        %1004 = vmatprep.mubr.bf16.mxu0 0
        %1005 = vmatmul.mubr.bf16.gmra.mrb[0].mxu0 %v970
        %v1006 = vpop.f32.mrb[0].mxu0
        %v1007 = vadd.f32 %v546, %v1006
        %v1008 = vpop.f32.mrb[0].mxu0
        %v1009 = vpop.f32.mrb[0].mxu0
        %v1010 = vpop.f32.mrb[0].mxu0
        %1011 = vdwg.mxu0
        %v1012 = vtanh.pop %v1007
        %v1013 = vpack.c.bf16 %v1012, %v1012
        %v1014 = vld [vmem:[%s8 + $0x10] sm:$0xf]
        %v1015 = vld [vmem:[%s8 + $0x14] sm:$0xf]
        %v1016 = vld [vmem:[%s8 + $0x18] sm:$0xf]
        %v1017 = vld [vmem:[%s8 + $0x1c] sm:$0xf]
        %v1022 = vunpack.c.l.b16 %v1014
        %v1023 = vunpack.c.l.b16 %v1015
        %v1024 = vunpack.c.l.b16 %v1016
        %v1025 = vunpack.c.l.b16 %v1017
        %v1026 = vpack.c.b16 %v1023, %v1022
        %v1027 = vpack.c.b16 %v1025, %v1024
        %v1031 = vsel %vm450, %v1013, 0
        %1033 = vmatprep.subr.bf16.mxu0 0
        %1034 = vmatpush1.bf16.msra.mxu0 %v1026
        %1035 = vmatprep.subr.bf16.mxu0 0
        %1036 = vmatpush1.bf16.msra.mxu0 %v1027
        %1037 = vmatprep.subr.bf16.mxu0 0
        %1038 = vmatpush1.bf16.msra.mxu0 0
        %1039 = vmatprep.subr.bf16.mxu0 0
        %1040 = vmatpush1.bf16.msra.mxu0 0
        %1041 = vmatprep.subr.bf16.mxu0 0
        %1042 = vmatpush1.bf16.msra.mxu0 0
        %1043 = vmatprep.subr.bf16.mxu0 0
        %1044 = vmatpush1.bf16.msra.mxu0 0
        %1045 = vmatprep.subr.bf16.mxu0 0
        %1046 = vmatpush1.bf16.msra.mxu0 0
        %1047 = vmatprep.subr.bf16.mxu0 0
        %1048 = vmatpush1.bf16.msra.mxu0 0
        %1049 = vmatprep.subr.bf16.mxu0 0
        %1050 = vmatpush1.bf16.msra.mxu0 0
        %1051 = vmatprep.subr.bf16.mxu0 0
        %1052 = vmatpush1.bf16.msra.mxu0 0
        %1053 = vmatprep.subr.bf16.mxu0 0
        %1054 = vmatpush1.bf16.msra.mxu0 0
        %1055 = vmatprep.subr.bf16.mxu0 0
        %1056 = vmatpush1.bf16.msra.mxu0 0
        %1057 = vmatprep.subr.bf16.mxu0 0
        %1058 = vmatpush1.bf16.msra.mxu0 0
        %1059 = vmatprep.subr.bf16.mxu0 0
        %1060 = vmatpush1.bf16.msra.mxu0 0
        %1061 = vmatprep.subr.bf16.mxu0 0
        %1062 = vmatpush1.bf16.msra.mxu0 0
        %1063 = vmatprep.subr.bf16.mxu0 0
        %1064 = vmatpush1.bf16.msra.mxu0 0
        %1065 = vmatprep.mubr.bf16.mxu0 0
        %1066 = vmatmul.mubr.bf16.gmra.mrb[0].mxu0 %v1031
        %v1067 = vpop.f32.mrb[0].mxu0
        %v1068 = vadd.f32 %v547, %v1067
        %v1069 = vpop.f32.mrb[0].mxu0
        %v1070 = vpop.f32.mrb[0].mxu0
        %v1071 = vpop.f32.mrb[0].mxu0
        %1072 = vdwg.mxu0
        %v1073 = vld [vmem:[%s3] sm:$0xf]
        %vm1074 = vcmask 31744
        %v1076 = vsel %vm1074, %v1073, 0
        %vm1078 = vcmask 1043456
        %v1080 = vsel %vm1078, %v1068, 0
        %1082 = vmatprep.subr.mxu0 0.0
        %1083 = vmatpush1.msra.mxu0 %v1080
        %1084 = vmatprep.subr.mxu0 0.0
        %1085 = vmatpush1.msra.mxu0 0.0
        %1086 = vmatprep.subr.mxu0 0.0
        %1087 = vmatpush1.msra.mxu0 0.0
        %1088 = vmatprep.subr.mxu0 0.0
        %1089 = vmatpush1.msra.mxu0 0.0
        %1090 = vmatprep.subr.mxu0 0.0
        %1091 = vmatpush1.msra.mxu0 0.0
        %1092 = vmatprep.subr.mxu0 0.0
        %1093 = vmatpush1.msra.mxu0 0.0
        %1094 = vmatprep.subr.mxu0 0.0
        %1095 = vmatpush1.msra.mxu0 0.0
        %1096 = vmatprep.subr.mxu0 0.0
        %1097 = vmatpush1.msra.mxu0 0.0
        %1098 = vmatprep.subr.mxu0 0.0
        %1099 = vmatpush1.msra.mxu0 0.0
        %1100 = vmatprep.subr.mxu0 0.0
        %1101 = vmatpush1.msra.mxu0 0.0
        %1102 = vmatprep.subr.mxu0 0.0
        %1103 = vmatpush1.msra.mxu0 0.0
        %1104 = vmatprep.subr.mxu0 0.0
        %1105 = vmatpush1.msra.mxu0 0.0
        %1106 = vmatprep.subr.mxu0 0.0
        %1107 = vmatpush1.msra.mxu0 0.0
        %1108 = vmatprep.subr.mxu0 0.0
        %1109 = vmatpush1.msra.mxu0 0.0
        %1110 = vmatprep.subr.mxu0 0.0
        %1111 = vmatpush1.msra.mxu0 0.0
        %1112 = vmatprep.subr.mxu0 0.0
        %1113 = vmatpush1.msra.mxu0 0.0
        %1114 = vmatprep.subr.mxu0 0.0
        %1115 = vmatpush1.msra.mxu0 0.0
        %1116 = vmatprep.subr.mxu0 0.0
        %1117 = vmatpush1.msra.mxu0 0.0
        %1118 = vmatprep.subr.mxu0 0.0
        %1119 = vmatpush1.msra.mxu0 0.0
        %1120 = vmatprep.subr.mxu0 0.0
        %1121 = vmatpush1.msra.mxu0 0.0
        %1122 = vmatprep.subr.mxu0 0.0
        %1123 = vmatpush1.msra.mxu0 0.0
        %1124 = vmatprep.subr.mxu0 0.0
        %1125 = vmatpush1.msra.mxu0 0.0
        %1126 = vmatprep.subr.mxu0 0.0
        %1127 = vmatpush1.msra.mxu0 0.0
        %1128 = vmatprep.subr.mxu0 0.0
        %1129 = vmatpush1.msra.mxu0 0.0
        %1130 = vmatprep.subr.mxu0 0.0
        %1131 = vmatpush1.msra.mxu0 0.0
        %1132 = vmatprep.subr.mxu0 0.0
        %1133 = vmatpush1.msra.mxu0 0.0
        %1134 = vmatprep.subr.mxu0 0.0
        %1135 = vmatpush1.msra.mxu0 0.0
        %1136 = vmatprep.subr.mxu0 0.0
        %1137 = vmatpush1.msra.mxu0 0.0
        %1138 = vmatprep.subr.mxu0 0.0
        %1139 = vmatpush1.msra.mxu0 0.0
        %1140 = vmatprep.subr.mxu0 0.0
        %1141 = vmatpush1.msra.mxu0 0.0
        %1142 = vmatprep.subr.mxu0 0.0
        %1143 = vmatpush1.msra.mxu0 0.0
        %1144 = vmatprep.subr.mxu0 0.0
        %1145 = vmatpush1.msra.mxu0 0.0
        %1146 = vmatprep.mubr.f32.mxu0 0.0
        %1147 = vmatmul.mubr.f32.gmra.mrb[0].mxu0 %v1076
        %v1148 = vpop.f32.mrb[0].mxu0
        %v1149 = vadd.f32 0.0, %v1148
        %v1150 = vpop.f32.mrb[0].mxu0
        %1151 = vdwg.mxu0
        %v1152 = vmul.f32 %v1149, 1.442695
        %v1153 = vpow.pop %v1152
        %v1154 = vadd.f32 %v1153, 1e-10
        %v1155 = vrsqrt.pop %v1154
        %v1156 = vmul.f32 %v1154, %v1155
        %vm1157 = vcmp.eq.f32.partialorder %v1154, inf
        %v1158 = vsel %vm1157, %v1154, %v1156
        %vm1159 = vcmp.eq.f32.partialorder %v1154, 0.0
        %v1160 = vand.u32 %v1154, 2147483648
        %v1161 = vsel %vm1159, %v1160, %v1158
        %1163 = vrot.lane.b32.xlu0 %v552, 32
        %v1164 = vpop.permute.xlu0 %1163
        %v1166 = vmul.f32 %v1161, %v1164
        %1168 = vrot.lane.b32.xlu0 %v1166, 96
        %v1169 = vpop.permute.xlu0 %1168
        %v1171 = vadd.f32 %v1149, %v1169
        %v1172 = vld [vmem:[%s4] sm:$0xf]
        %v1174 = vsel %vm1074, %v1172, 0
        %v1177 = vsel %vm1078, %v1171, 0
        %1179 = vmatprep.subr.mxu0 0.0
        %1180 = vmatpush1.msra.mxu0 %v1177
        %1181 = vmatprep.subr.mxu0 0.0
        %1182 = vmatpush1.msra.mxu0 0.0
        %1183 = vmatprep.subr.mxu0 0.0
        %1184 = vmatpush1.msra.mxu0 0.0
        %1185 = vmatprep.subr.mxu0 0.0
        %1186 = vmatpush1.msra.mxu0 0.0
        %1187 = vmatprep.subr.mxu0 0.0
        %1188 = vmatpush1.msra.mxu0 0.0
        %1189 = vmatprep.subr.mxu0 0.0
        %1190 = vmatpush1.msra.mxu0 0.0
        %1191 = vmatprep.subr.mxu0 0.0
        %1192 = vmatpush1.msra.mxu0 0.0
        %1193 = vmatprep.subr.mxu0 0.0
        %1194 = vmatpush1.msra.mxu0 0.0
        %1195 = vmatprep.subr.mxu0 0.0
        %1196 = vmatpush1.msra.mxu0 0.0
        %1197 = vmatprep.subr.mxu0 0.0
        %1198 = vmatpush1.msra.mxu0 0.0
        %1199 = vmatprep.subr.mxu0 0.0
        %1200 = vmatpush1.msra.mxu0 0.0
        %1201 = vmatprep.subr.mxu0 0.0
        %1202 = vmatpush1.msra.mxu0 0.0
        %1203 = vmatprep.subr.mxu0 0.0
        %1204 = vmatpush1.msra.mxu0 0.0
        %1205 = vmatprep.subr.mxu0 0.0
        %1206 = vmatpush1.msra.mxu0 0.0
        %1207 = vmatprep.subr.mxu0 0.0
        %1208 = vmatpush1.msra.mxu0 0.0
        %1209 = vmatprep.subr.mxu0 0.0
        %1210 = vmatpush1.msra.mxu0 0.0
        %1211 = vmatprep.subr.mxu0 0.0
        %1212 = vmatpush1.msra.mxu0 0.0
        %1213 = vmatprep.subr.mxu0 0.0
        %1214 = vmatpush1.msra.mxu0 0.0
        %1215 = vmatprep.subr.mxu0 0.0
        %1216 = vmatpush1.msra.mxu0 0.0
        %1217 = vmatprep.subr.mxu0 0.0
        %1218 = vmatpush1.msra.mxu0 0.0
        %1219 = vmatprep.subr.mxu0 0.0
        %1220 = vmatpush1.msra.mxu0 0.0
        %1221 = vmatprep.subr.mxu0 0.0
        %1222 = vmatpush1.msra.mxu0 0.0
        %1223 = vmatprep.subr.mxu0 0.0
        %1224 = vmatpush1.msra.mxu0 0.0
        %1225 = vmatprep.subr.mxu0 0.0
        %1226 = vmatpush1.msra.mxu0 0.0
        %1227 = vmatprep.subr.mxu0 0.0
        %1228 = vmatpush1.msra.mxu0 0.0
        %1229 = vmatprep.subr.mxu0 0.0
        %1230 = vmatpush1.msra.mxu0 0.0
        %1231 = vmatprep.subr.mxu0 0.0
        %1232 = vmatpush1.msra.mxu0 0.0
        %1233 = vmatprep.subr.mxu0 0.0
        %1234 = vmatpush1.msra.mxu0 0.0
        %1235 = vmatprep.subr.mxu0 0.0
        %1236 = vmatpush1.msra.mxu0 0.0
        %1237 = vmatprep.subr.mxu0 0.0
        %1238 = vmatpush1.msra.mxu0 0.0
        %1239 = vmatprep.subr.mxu0 0.0
        %1240 = vmatpush1.msra.mxu0 0.0
        %1241 = vmatprep.subr.mxu0 0.0
        %1242 = vmatpush1.msra.mxu0 0.0
        %1243 = vmatprep.mubr.f32.mxu0 0.0
        %1244 = vmatmul.mubr.f32.gmra.mrb[0].mxu0 %v1174
        %v1245 = vpop.f32.mrb[0].mxu0
        %v1246 = vadd.f32 0.0, %v1245
        %v1247 = vpop.f32.mrb[0].mxu0
        %1248 = vdwg.mxu0
        %v1249 = vpack.c.bf16 %v1246, %v1246
        %v1250 = vld [vmem:[%s8 + $0x20] sm:$0xf]
        %v1251 = vld [vmem:[%s8 + $0x24] sm:$0xf]
        %v1252 = vld [vmem:[%s8 + $0x28] sm:$0xf]
        %v1253 = vld [vmem:[%s8 + $0x2c] sm:$0xf]
        %v1258 = vunpack.c.l.b16 %v1250
        %v1259 = vunpack.c.l.b16 %v1251
        %v1260 = vunpack.c.l.b16 %v1252
        %v1261 = vunpack.c.l.b16 %v1253
        %v1262 = vpack.c.b16 %v1259, %v1258
        %v1263 = vpack.c.b16 %v1261, %v1260
        %v1267 = vsel %vm450, %v1249, 0
        %1269 = vmatprep.subr.bf16.mxu0 0
        %1270 = vmatpush1.bf16.msra.mxu0 %v1262
        %1271 = vmatprep.subr.bf16.mxu0 0
        %1272 = vmatpush1.bf16.msra.mxu0 %v1263
        %1273 = vmatprep.subr.bf16.mxu0 0
        %1274 = vmatpush1.bf16.msra.mxu0 0
        %1275 = vmatprep.subr.bf16.mxu0 0
        %1276 = vmatpush1.bf16.msra.mxu0 0
        %1277 = vmatprep.subr.bf16.mxu0 0
        %1278 = vmatpush1.bf16.msra.mxu0 0
        %1279 = vmatprep.subr.bf16.mxu0 0
        %1280 = vmatpush1.bf16.msra.mxu0 0
        %1281 = vmatprep.subr.bf16.mxu0 0
        %1282 = vmatpush1.bf16.msra.mxu0 0
        %1283 = vmatprep.subr.bf16.mxu0 0
        %1284 = vmatpush1.bf16.msra.mxu0 0
        %1285 = vmatprep.subr.bf16.mxu0 0
        %1286 = vmatpush1.bf16.msra.mxu0 0
        %1287 = vmatprep.subr.bf16.mxu0 0
        %1288 = vmatpush1.bf16.msra.mxu0 0
        %1289 = vmatprep.subr.bf16.mxu0 0
        %1290 = vmatpush1.bf16.msra.mxu0 0
        %1291 = vmatprep.subr.bf16.mxu0 0
        %1292 = vmatpush1.bf16.msra.mxu0 0
        %1293 = vmatprep.subr.bf16.mxu0 0
        %1294 = vmatpush1.bf16.msra.mxu0 0
        %1295 = vmatprep.subr.bf16.mxu0 0
        %1296 = vmatpush1.bf16.msra.mxu0 0
        %1297 = vmatprep.subr.bf16.mxu0 0
        %1298 = vmatpush1.bf16.msra.mxu0 0
        %1299 = vmatprep.subr.bf16.mxu0 0
        %1300 = vmatpush1.bf16.msra.mxu0 0
        %1301 = vmatprep.mubr.bf16.mxu0 0
        %1302 = vmatmul.mubr.bf16.gmra.mrb[0].mxu0 %v1267
        %v1303 = vpop.f32.mrb[0].mxu0
        %v1304 = vadd.f32 %v548, %v1303
        %v1305 = vpop.f32.mrb[0].mxu0
        %v1306 = vpop.f32.mrb[0].mxu0
        %v1307 = vpop.f32.mrb[0].mxu0
        %1308 = vdwg.mxu0
        %v1309 = vtanh.pop %v1304
        %v1310 = vpack.c.bf16 %v1309, %v1309
        %v1311 = vld [vmem:[%s8 + $0x30] sm:$0xf]
        %v1312 = vld [vmem:[%s8 + $0x34] sm:$0xf]
        %v1313 = vld [vmem:[%s8 + $0x38] sm:$0xf]
        %v1314 = vld [vmem:[%s8 + $0x3c] sm:$0xf]
        %v1319 = vunpack.c.l.b16 %v1311
        %v1320 = vunpack.c.l.b16 %v1312
        %v1321 = vunpack.c.l.b16 %v1313
        %v1322 = vunpack.c.l.b16 %v1314
        %v1323 = vpack.c.b16 %v1320, %v1319
        %v1324 = vpack.c.b16 %v1322, %v1321
        %v1328 = vsel %vm450, %v1310, 0
        %1330 = vmatprep.subr.bf16.mxu0 0
        %1331 = vmatpush1.bf16.msra.mxu0 %v1323
        %1332 = vmatprep.subr.bf16.mxu0 0
        %1333 = vmatpush1.bf16.msra.mxu0 %v1324
        %1334 = vmatprep.subr.bf16.mxu0 0
        %1335 = vmatpush1.bf16.msra.mxu0 0
        %1336 = vmatprep.subr.bf16.mxu0 0
        %1337 = vmatpush1.bf16.msra.mxu0 0
        %1338 = vmatprep.subr.bf16.mxu0 0
        %1339 = vmatpush1.bf16.msra.mxu0 0
        %1340 = vmatprep.subr.bf16.mxu0 0
        %1341 = vmatpush1.bf16.msra.mxu0 0
        %1342 = vmatprep.subr.bf16.mxu0 0
        %1343 = vmatpush1.bf16.msra.mxu0 0
        %1344 = vmatprep.subr.bf16.mxu0 0
        %1345 = vmatpush1.bf16.msra.mxu0 0
        %1346 = vmatprep.subr.bf16.mxu0 0
        %1347 = vmatpush1.bf16.msra.mxu0 0
        %1348 = vmatprep.subr.bf16.mxu0 0
        %1349 = vmatpush1.bf16.msra.mxu0 0
        %1350 = vmatprep.subr.bf16.mxu0 0
        %1351 = vmatpush1.bf16.msra.mxu0 0
        %1352 = vmatprep.subr.bf16.mxu0 0
        %1353 = vmatpush1.bf16.msra.mxu0 0
        %1354 = vmatprep.subr.bf16.mxu0 0
        %1355 = vmatpush1.bf16.msra.mxu0 0
        %1356 = vmatprep.subr.bf16.mxu0 0
        %1357 = vmatpush1.bf16.msra.mxu0 0
        %1358 = vmatprep.subr.bf16.mxu0 0
        %1359 = vmatpush1.bf16.msra.mxu0 0
        %1360 = vmatprep.subr.bf16.mxu0 0
        %1361 = vmatpush1.bf16.msra.mxu0 0
        %1362 = vmatprep.mubr.bf16.mxu0 0
        %1363 = vmatmul.mubr.bf16.gmra.mrb[0].mxu0 %v1328
        %v1364 = vpop.f32.mrb[0].mxu0
        %v1365 = vadd.f32 %v549, %v1364
        %v1366 = vpop.f32.mrb[0].mxu0
        %v1367 = vpop.f32.mrb[0].mxu0
        %v1368 = vpop.f32.mrb[0].mxu0
        %1369 = vdwg.mxu0
        %1371 = vrot.lane.b32.xlu0 %v1149, 8
        %v1372 = vpop.permute.xlu0 %1371
        %vm1374 = vcmask 64512
        %v1375 = vsel %vm1374, %v1365, %v1372
        %vm1376 = vcmask 588800
        %v1377 = vsel %vm1376, %v1375, 0.0
        %1378 = vst [vmem:[%s351] sm:$0xf] %v1377
        %s1379 = sand.u32 %s235, 1
        %s1380 = scalar_lea.sflag [#allocation4], %s1379
        %s1381 = sand.u32 %s235, 1
        %s1382 = smul.addr %s1381, 4
        %s1383 = scalar_lea.vmem [#allocation3], %s1382
        // Predicated region
        $region57: #{tpu_custom_call.1} parent=55 // pred_check
          %p1384 = pneg %p245
        $region58: #{tpu_custom_call.1} parent=55 // pred_check_branch
          %1386 = sbr.rel (%p1384) target = $region60
        $region59: #{tpu_custom_call.1} parent=55 // pred_region
          %s1388 = ssub.s32 64, 64
          %1389 = vsyncadd %s1380, %s1388
          %s1390 = smul.addr %s23, 64
          %s1391 = scalar_lea.hbm %s9, %s1390
          %s1393 = sshll.u32 %s1383, 4
          %s1394 = int_to_ptr.vmem [resolvable:$true] %s1393
          %1396 = dma.vmem_to_hbm [thread:$0]  %s1394, 64, %s1391, %s1380
        $region60: #{tpu_custom_call.1} parent=55 // pred_fallthru
          _
      $region56: #{tpu_custom_call.1} parent=5 // pred_fallthru
        _
      %p1397 = scmp.le.s32.totalorder 2, %s18
      // Predicated region
      $region61: #{tpu_custom_call.1} parent=5 // pred_check
        %p1398 = pneg %p1397
      $region62: #{tpu_custom_call.1} parent=5 // pred_check_branch
        %1400 = sbr.rel (%p1398) target = $region64
      $region63: #{tpu_custom_call.1} parent=5 // pred_region
        %s1401 = ssub.s32 %s18, 2
        // Predicated region
        $region65: #{tpu_custom_call.1} parent=63 // pred_check
          %p1402 = pneg %p251
        $region66: #{tpu_custom_call.1} parent=63 // pred_check_branch
          %1404 = sbr.rel (%p1402) target = $region68
        $region67: #{tpu_custom_call.1} parent=63 // pred_region
          %s1405 = sand.u32 %s236, 1
          %s1406 = scalar_lea.sflag [#allocation4], %s1405
          %s1407 = sand.u32 %s236, 1
          %s1408 = smul.addr %s1407, 4
          %s1409 = scalar_lea.vmem [#allocation3], %s1408
          %1410 = dma.done %s1406, 64
        $region68: #{tpu_custom_call.1} parent=63 // pred_fallthru
          _
      $region64: #{tpu_custom_call.1} parent=5 // pred_fallthru
        _
    $region6: #{tpu_custom_call.1} parent=1 // loop_footer
      %s22 = sadd.s32 1, %s18
    $region7: #{tpu_custom_call.1} parent=1 // loop_footer_branch
      %17 = sbr.rel target = $region3
    $region8: #{tpu_custom_call.1} parent=1 // loop_exit
      _
    %1411 = vsyncpa [#allocation4], 1
    %s1412 = scalar_lea.sflag [#allocation4], 1
    %1413 = vsyncpa %s1412, 1

</llo_original>
